<compile_context>
chip_gen: v7x
topology: tpu7x:2x2x1
jax: 0.10.0
libtpu: 0.0.40
codegen_flags: <defaults>
</compile_context>

<pallas_src>
import numpy as np
import jax
import jax.numpy as jnp
from jax.experimental import pallas as pl
from jax.experimental.pallas import tpu as pltpu


def _round_up(x, m):
    return (x + m - 1) // m * m


# ---------------------------------------------------------------------------
# Fused kernel: stacked-MLP transition scores + SoPa recurrence per time chunk
# ---------------------------------------------------------------------------
def make_fused_kernel(T, B8, H, PLpad):
    Mcols = 2 * PLpad   # [ self-loop block | pre-shifted main-path block ]

    def kernel(x_ref, w1_ref, b1_ref, w2_ref, b2_ref,
               eps_ref, eps_sh_ref, start_ref, lens_ref,
               acc_ref, trans_ref, hid_ref):
        i = pl.program_id(0)

        @pl.when(i == 0)
        def _init():
            hid_ref[...] = jnp.zeros_like(hid_ref) + start_ref[...]  # state 0 = one
            acc_ref[...] = jnp.zeros_like(acc_ref)

        # ---- Stage 1: all P*2*L tiny MLPs for this T-step chunk -------------
        # One MXU matmul (h-major stacked columns), then the 2nd MLP layer as
        # H lane-aligned VPU FMAs (no block-diagonal matmul).  Pad / unmapped
        # columns have bias -1e9 -> sigmoid == 0 == semiring.zero exactly.
        # NOTE: for very large T*B8 split this matmul per-h to bound the
        # (T*B8, H*Mcols) intermediate.
        hmat = jnp.dot(x_ref[...], w1_ref[...],
                       preferred_element_type=jnp.float32) + b1_ref[...]
        hmat = jnp.where(hmat >= 0, hmat, 0.1 * hmat)          # LeakyReLU(0.1)
        y = hmat[:, 0:Mcols] * w2_ref[0:1, :]
        for h in range(1, H):
            y = y + hmat[:, h * Mcols:(h + 1) * Mcols] * w2_ref[h:h + 1, :]
        trans_ref[...] = jax.nn.sigmoid(y + b2_ref[...])       # semiring.from_float

        # ---- Stage 2: SoPa recurrence over the T time steps of this chunk ---
        eps = eps_ref[...]        # (1, PLpad): 0 at each pattern's state 0 / pad
        eps_sh = eps_sh_ref[...]  # eps pre-shifted by one state (wrapper-side roll)
        start = start_ref[...]    # (1, PLpad): 1 at each pattern's state 0
        lens = lens_ref[...]      # (B8, 1) f32 document lengths (0 on pad rows)

        def step(t, carry):
            hid, acc = carry
            row = pl.multiple_of(t * B8, B8)
            tr = trans_ref[pl.ds(row, B8), :]                  # (B8, 2*PLpad)
            t_self = tr[:, :PLpad]                             # diag-0 scores
            t_main = tr[:, PLpad:]                             # pre-shifted diag-1 scores
            r1 = pltpu.roll(hid, shift=1, axis=1)              # both rolls depend
            r2 = pltpu.roll(hid, shift=2, axis=1)              # only on hid
            ae = hid + r1 * eps                                # after_epsilons
            mp = (r1 + r2 * eps_sh) * t_main + start           # after_main_paths (+restart)
            new_hid = mp + ae * t_self                         # + after_self_loops
            act = jnp.where(lens > (i * T + t).astype(jnp.float32), 1.0, 0.0)
            return new_hid, acc + act * new_hid                # masked score accumulation

        hid, acc = jax.lax.fori_loop(0, T, step, (hid_ref[...], acc_ref[...]),
                                     unroll=min(8, T))
        hid_ref[...] = hid
        acc_ref[...] = acc

    return kernel


# ---------------------------------------------------------------------------
# Wrapper
# ---------------------------------------------------------------------------
def soft_pattern_classifier_forward(batch, mask, params, pattern_specs, H,
                                    time_chunk=32, matmul_dtype=jnp.float32):
    B, D, N = batch.shape
    P = sum(pattern_specs.values())          # total_num_patterns
    L = max(pattern_specs.keys())            # max_pattern_length
    num_diags = 2
    M = P * num_diags * L                    # number of static MLPs
    PL = P * L
    PLpad = _round_up(PL, 128)               # lane-dense / roll-friendly padding
    Mcols = num_diags * PLpad
    B8 = max(_round_up(B, 8), 8)             # fill all 8 sublanes of every vreg
    T = min(time_chunk, _round_up(N, 8))     # time steps per sequential grid step
    N_pad = _round_up(N, T)

    W1, b1, W2, b2, epsilon = (params["W1"], params["b1"], params["W2"],
                               params["b2"], params["epsilon"])

    # ---- static column map for the stacked MLPs (built once on host) --------
    #   diag-0 (self-loop)  MLP (p, l)      -> column p*L + l             (block 0)
    #   diag-1 (main-path)  MLP (p, l<=L-2) -> column PLpad + p*L + l + 1 (block 1,
    #       pre-shifted so the recurrence needs no roll of the scores)
    #   diag-1, l == L-1 is never read by the recurrence -> dropped.
    m_all = np.arange(M)
    p_idx = m_all // (num_diags * L)
    d_idx = (m_all // L) % num_diags
    l_idx = m_all % L
    valid = ~((d_idx == 1) & (l_idx == L - 1))
    col = np.where(d_idx == 0, p_idx * L + l_idx, PLpad + p_idx * L + l_idx + 1)
    mv = m_all[valid]
    cv = col[valid]
    nv = mv.size

    # first layer: (D, H*Mcols), h-major column blocks
    cols_hm = (np.arange(H)[:, None] * Mcols + cv[None, :]).reshape(-1)
    w1_vals = jnp.transpose(W1[mv], (1, 2, 0)).reshape(D, H * nv)
    W1s = jnp.zeros((D, H * Mcols), jnp.float32).at[:, cols_hm].set(w1_vals)
    b1_vals = jnp.transpose(b1[mv, 0, :], (1, 0)).reshape(H * nv)
    b1s = jnp.zeros((1, H * Mcols), jnp.float32).at[0, cols_hm].set(b1_vals)
    # second layer: one weight row per hidden unit; unmapped/pad columns get
    # bias -1e9 so sigmoid() == 0 == semiring.zero exactly.
    w2s = jnp.zeros((H, Mcols), jnp.float32).at[:, cv].set(W2[mv, 0, :].T)
    b2s = jnp.full((1, Mcols), -1e9, jnp.float32).at[0, cv].set(b2[mv, 0, 0])

    # ---- recurrence constants in the flattened (p*L + l) lane layout --------
    eps_val = jax.nn.sigmoid(epsilon)                          # semiring.from_float
    eps_cols = (np.arange(P)[:, None] * L + np.arange(1, L)[None, :]).reshape(-1)
    eps_flat = jnp.zeros((1, PLpad), jnp.float32).at[0, eps_cols].set(
        eps_val.reshape(-1))
    eps_sh = jnp.roll(eps_flat, 1, axis=1)                     # pre-shifted, one time
    start = jnp.zeros((1, PLpad), jnp.float32).at[0, np.arange(P) * L].set(1.0)

    doc_lens = jnp.sum(mask, axis=1).astype(jnp.float32)       # (B,)
    lens = jnp.zeros((B8, 1), jnp.float32).at[:B, 0].set(doc_lens)

    # ---- tokens-major activations, (n, b) rows, padded to (N_pad, B8) -------
    # TODO(synk): feed batch (B, D, N) directly (b-major rows) or use
    # allow_input_fusion to drop this one-time XLA transpose of the activations.
    x = jnp.transpose(batch, (2, 0, 1))                        # (N, B, D)
    x = jnp.pad(x, ((0, N_pad - N), (0, B8 - B), (0, 0)))
    x_t = x.reshape(N_pad * B8, D).astype(matmul_dtype)
    W1s = W1s.astype(matmul_dtype)

    # TODO(synk): on v7x, add a leading "parallel" grid axis over batch blocks
    # (worthwhile once B >= 16) so the second TensorCore shares the recurrence.
    acc = pl.pallas_call(
        make_fused_kernel(T, B8, H, PLpad),
        out_shape=jax.ShapeDtypeStruct((B8, PLpad), jnp.float32),
        grid_spec=pltpu.PrefetchScalarGridSpec(
            num_scalar_prefetch=0,
            grid=(N_pad // T,),
            in_specs=[
                pl.BlockSpec((T * B8, D), lambda i: (i, 0)),       # x chunk (per step)
                pl.BlockSpec((D, H * Mcols), lambda i: (0, 0)),    # W1 stacked (resident)
                pl.BlockSpec((1, H * Mcols), lambda i: (0, 0)),    # b1 stacked
                pl.BlockSpec((H, Mcols), lambda i: (0, 0)),        # W2 rows
                pl.BlockSpec((1, Mcols), lambda i: (0, 0)),        # b2 (+ -1e9 pads)
                pl.BlockSpec((1, PLpad), lambda i: (0, 0)),        # eps
                pl.BlockSpec((1, PLpad), lambda i: (0, 0)),        # eps pre-shifted
                pl.BlockSpec((1, PLpad), lambda i: (0, 0)),        # restart/start
                pl.BlockSpec((B8, 1), lambda i: (0, 0)),           # doc lengths
            ],
            out_specs=pl.BlockSpec((B8, PLpad), lambda i: (0, 0)), # resident accumulator
            scratch_shapes=[
                pltpu.VMEM((T * B8, Mcols), jnp.float32),          # per-chunk transition scores
                pltpu.VMEM((B8, PLpad), jnp.float32),              # recurrence state
            ]),
        compiler_params=pltpu.CompilerParams(
            dimension_semantics=("arbitrary",),
            vmem_limit_bytes=48 * 1024 * 1024),
    )(x_t, W1s, b1s, w2s, b2s, eps_flat, eps_sh, start, lens)

    # end-state pick (semiring.to_float == identity)
    end_states = np.array(
        [plen - 1 for plen, cnt in pattern_specs.items() for _ in range(cnt)],
        dtype=np.int32)
    cols = np.arange(P, dtype=np.int32) * L + end_states
    return acc[:B][:, cols]                                    # (B, P)


# ---------------------------------------------------------------------------
# Pure-JAX reference (mirrors the torch forward) for verification
# ---------------------------------------------------------------------------
def reference_forward(batch, mask, params, pattern_specs):
    B, D, N = batch.shape
    P = sum(pattern_specs.values())
    L = max(pattern_specs.keys())
    M = P * 2 * L
    W1, b1, W2, b2, epsilon = (params["W1"], params["b1"], params["W2"],
                               params["b2"], params["epsilon"])

    x = jnp.transpose(batch, (0, 2, 1)).reshape(B * N, D)
    h = jnp.einsum("nd,mdh->mnh", x, W1) + b1              # (M, BN, H)
    h = jnp.where(h >= 0, h, 0.1 * h)
    y = jnp.sum(h * W2, axis=2) + b2[:, :, 0]              # (M, BN)
    trans = jax.nn.sigmoid(y).reshape(M, B, N)
    trans = jnp.transpose(trans, (1, 2, 0)).reshape(B, N, P, 2, L)
    trans = jnp.transpose(trans, (1, 0, 2, 3, 4))          # (N, B, P, 2, L)

    eps_val = jax.nn.sigmoid(epsilon)
    end_states = jnp.array(
        [plen - 1 for plen, cnt in pattern_specs.items() for _ in range(cnt)],
        dtype=jnp.int32)
    doc_lens = jnp.sum(mask, axis=1)
    hiddens = jnp.zeros((B, P, L), jnp.float32).at[:, :, 0].set(1.0)
    scores = jnp.zeros((B, P), jnp.float32)
    for i in range(N):
        tmat = trans[i]
        after_eps = hiddens + jnp.concatenate(
            [jnp.zeros((B, P, 1)), hiddens[:, :, :-1] * eps_val[None]], axis=2)
        main = jnp.concatenate(
            [jnp.ones((B, P, 1)), after_eps[:, :, :-1] * tmat[:, :, 1, :-1]], axis=2)
        hiddens = main + after_eps * tmat[:, :, 0, :]
        end_vals = hiddens[:, jnp.arange(P), end_states]
        active = doc_lens > i
        scores = scores + jnp.where(active[:, None], end_vals, 0.0)
    return scores


if __name__ == "__main__":
    B, D, N = 2, 16, 8
    pattern_specs = {3: 2, 4: 1}        # 2 patterns of length 3, 1 of length 4
    P = sum(pattern_specs.values())     # 3
    L = max(pattern_specs.keys())       # 4
    H = 8                               # NN_mlp_pattern = [8]
    M = P * 2 * L                       # 24 independent MLPs

    key = jax.random.PRNGKey(0)
    k = jax.random.split(key, 6)
    batch = jax.random.normal(k[0], (B, D, N), jnp.float32)
    lens = jnp.array([N, 5], jnp.int32)
    mask = (jnp.arange(N)[None, :] < lens[:, None]).astype(jnp.int32)

    params = dict(
        W1=jax.random.normal(k[1], (M, D, H), jnp.float32) / jnp.sqrt(D),
        b1=jax.random.normal(k[2], (M, 1, H), jnp.float32) * 0.1,
        W2=jax.random.normal(k[3], (M, 1, H), jnp.float32) / jnp.sqrt(H),
        b2=jax.random.normal(k[4], (M, 1, 1), jnp.float32) * 0.1,
        epsilon=jax.random.normal(k[5], (P, L - 1), jnp.float32),
    )

    ref = reference_forward(batch, mask, params, pattern_specs)

    # f32 MXU path: tight check against the f32 reference.
    out = soft_pattern_classifier_forward(batch, mask, params, pattern_specs, H,
                                          matmul_dtype=jnp.float32)
    out = jax.block_until_ready(out)
    assert out.shape == (B, P)
    assert jnp.allclose(out, ref, rtol=1e-4, atol=1e-4), (out, ref)

    # bf16 MXU-input path (v6e/v7x recommendation), f32 accumulation: loose check.
    out_bf = soft_pattern_classifier_forward(batch, mask, params, pattern_specs, H,
                                             matmul_dtype=jnp.bfloat16)
    out_bf = jax.block_until_ready(out_bf)
    assert jnp.allclose(out_bf, ref, rtol=1e-1, atol=1e-1), (out_bf, ref)

    print("KERNEL_OK")
</pallas_src>

<mosaic_0001>
module attributes {stable_mosaic.version = 11 : i64} {
  func.func @kernel(%arg0: i32, %arg1: memref<64x16xf32, #tpu.memory_space<vmem>>, %arg2: memref<16x2048xf32, #tpu.memory_space<vmem>>, %arg3: memref<1x2048xf32, #tpu.memory_space<vmem>>, %arg4: memref<8x256xf32, #tpu.memory_space<vmem>>, %arg5: memref<1x256xf32, #tpu.memory_space<vmem>>, %arg6: memref<1x128xf32, #tpu.memory_space<vmem>>, %arg7: memref<1x128xf32, #tpu.memory_space<vmem>>, %arg8: memref<1x128xf32, #tpu.memory_space<vmem>>, %arg9: memref<8x1xf32, #tpu.memory_space<vmem>>, %arg10: memref<8x128xf32, #tpu.memory_space<vmem>>, %arg11: memref<64x256xf32, #tpu.memory_space<vmem>>, %arg12: memref<8x128xf32, #tpu.memory_space<vmem>>) attributes {dimension_semantics = [#tpu.dimension_semantics<arbitrary>], iteration_bounds = array<i64: 1>, scalar_prefetch = 0 : i64, scratch_operands = 2 : i64, tpu.core_type = #tpu.core_type<tc>, window_params = [{transform_indices = @transform_0, window_bounds = array<i64: 64, 16>}, {pipeline_mode = #tpu.pipeline_mode<synchronous>, transform_indices = @transform_1, window_bounds = array<i64: 16, 2048>}, {pipeline_mode = #tpu.pipeline_mode<synchronous>, transform_indices = @transform_2, window_bounds = array<i64: 1, 2048>}, {pipeline_mode = #tpu.pipeline_mode<synchronous>, transform_indices = @transform_3, window_bounds = array<i64: 8, 256>}, {pipeline_mode = #tpu.pipeline_mode<synchronous>, transform_indices = @transform_4, window_bounds = array<i64: 1, 256>}, {pipeline_mode = #tpu.pipeline_mode<synchronous>, transform_indices = @transform_5, window_bounds = array<i64: 1, 128>}, {pipeline_mode = #tpu.pipeline_mode<synchronous>, transform_indices = @transform_6, window_bounds = array<i64: 1, 128>}, {pipeline_mode = #tpu.pipeline_mode<synchronous>, transform_indices = @transform_7, window_bounds = array<i64: 1, 128>}, {pipeline_mode = #tpu.pipeline_mode<synchronous>, transform_indices = @transform_8, window_bounds = array<i64: 8, 1>}, {pipeline_mode = #tpu.pipeline_mode<synchronous>, transform_indices = @transform_9, window_bounds = array<i64: 8, 128>}]} {
    %c0_i32 = arith.constant 0 : i32
    %0 = arith.cmpi eq, %arg0, %c0_i32 : i32
    %1 = arith.extui %0 : i1 to i32
    %c0_i32_0 = arith.constant 0 : i32
    %2 = arith.cmpi ne, %1, %c0_i32_0 : i32
    scf.if %2 {
      %cst_95 = arith.constant 0.000000e+00 : f32
      %310 = vector.broadcast %cst_95 : f32 to vector<8x128xf32>
      %c0_96 = arith.constant 0 : index
      %c0_97 = arith.constant 0 : index
      %311 = vector.load %arg8[%c0_96, %c0_97] : memref<1x128xf32, #tpu.memory_space<vmem>>, vector<1x128xf32>
      %312 = vector.broadcast %311 : vector<1x128xf32> to vector<8x128xf32>
      %313 = arith.addf %310, %312 : vector<8x128xf32>
      %c0_98 = arith.constant 0 : index
      %c0_99 = arith.constant 0 : index
      %314 = vector.load %arg12[%c0_98, %c0_99] : memref<8x128xf32, #tpu.memory_space<vmem>>, vector<8x128xf32>
      tpu.vector_store %arg12[%c0_98, %c0_99], %313 {strides = array<i32>} : memref<8x128xf32, #tpu.memory_space<vmem>>, vector<8x128xf32>,
      %cst_100 = arith.constant 0.000000e+00 : f32
      %315 = vector.broadcast %cst_100 : f32 to vector<8x128xf32>
      %c0_101 = arith.constant 0 : index
      %c0_102 = arith.constant 0 : index
      %316 = vector.load %arg10[%c0_101, %c0_102] : memref<8x128xf32, #tpu.memory_space<vmem>>, vector<8x128xf32>
      tpu.vector_store %arg10[%c0_101, %c0_102], %315 {strides = array<i32>} : memref<8x128xf32, #tpu.memory_space<vmem>>, vector<8x128xf32>,
    } else {
    }
    %c0 = arith.constant 0 : index
    %c0_1 = arith.constant 0 : index
    %3 = vector.load %arg1[%c0, %c0_1] : memref<64x16xf32, #tpu.memory_space<vmem>>, vector<64x16xf32>
    %c0_2 = arith.constant 0 : index
    %c0_3 = arith.constant 0 : index
    %4 = vector.load %arg2[%c0_2, %c0_3] : memref<16x2048xf32, #tpu.memory_space<vmem>>, vector<16x2048xf32>
    %cst = arith.constant dense<0.000000e+00> : vector<64x2048xf32>
    %5 = tpu.matmul %3, %4, %cst {dimension_numbers = #tpu.dot_dimension_numbers<[1], [0], [0], [1], [0, 0, 1, 1], [], []>} : vector<64x16xf32>, vector<16x2048xf32>, vector<64x2048xf32> -> vector<64x2048xf32>
    %c0_4 = arith.constant 0 : index
    %c0_5 = arith.constant 0 : index
    %6 = vector.load %arg3[%c0_4, %c0_5] : memref<1x2048xf32, #tpu.memory_space<vmem>>, vector<1x2048xf32>
    %7 = vector.broadcast %6 : vector<1x2048xf32> to vector<64x2048xf32>
    %8 = arith.addf %5, %7 : vector<64x2048xf32>
    %cst_6 = arith.constant 0.000000e+00 : f32
    %9 = vector.broadcast %cst_6 : f32 to vector<64x2048xf32>
    %10 = arith.cmpf oge, %8, %9 : vector<64x2048xf32>
    %cst_7 = arith.constant 1.000000e-01 : f32
    %11 = vector.broadcast %cst_7 : f32 to vector<64x2048xf32>
    %12 = arith.mulf %11, %8 : vector<64x2048xf32>
    %13 = arith.select %10, %8, %12 : vector<64x2048xi1>, vector<64x2048xf32>
    %14 = vector.extract_strided_slice %13 {offsets = [0, 0], sizes = [64, 256], strides = [1, 1]} : vector<64x2048xf32> to vector<64x256xf32>
    %c0_8 = arith.constant 0 : index
    %c0_9 = arith.constant 0 : index
    %15 = vector.load %arg4[%c0_8, %c0_9] : memref<8x256xf32, #tpu.memory_space<vmem>>, vector<1x256xf32>
    %16 = vector.broadcast %15 : vector<1x256xf32> to vector<64x256xf32>
    %17 = arith.mulf %14, %16 : vector<64x256xf32>
    %18 = vector.extract_strided_slice %13 {offsets = [0, 256], sizes = [64, 256], strides = [1, 1]} : vector<64x2048xf32> to vector<64x256xf32>
    %c1 = arith.constant 1 : index
    %c0_10 = arith.constant 0 : index
    %19 = vector.load %arg4[%c1, %c0_10] : memref<8x256xf32, #tpu.memory_space<vmem>>, vector<1x256xf32>
    %20 = vector.broadcast %19 : vector<1x256xf32> to vector<64x256xf32>
    %21 = arith.mulf %18, %20 : vector<64x256xf32>
    %22 = arith.addf %17, %21 : vector<64x256xf32>
    %23 = vector.extract_strided_slice %13 {offsets = [0, 512], sizes = [64, 256], strides = [1, 1]} : vector<64x2048xf32> to vector<64x256xf32>
    %c2 = arith.constant 2 : index
    %c0_11 = arith.constant 0 : index
    %24 = vector.load %arg4[%c2, %c0_11] : memref<8x256xf32, #tpu.memory_space<vmem>>, vector<1x256xf32>
    %25 = vector.broadcast %24 : vector<1x256xf32> to vector<64x256xf32>
    %26 = arith.mulf %23, %25 : vector<64x256xf32>
    %27 = arith.addf %22, %26 : vector<64x256xf32>
    %28 = vector.extract_strided_slice %13 {offsets = [0, 768], sizes = [64, 256], strides = [1, 1]} : vector<64x2048xf32> to vector<64x256xf32>
    %c3 = arith.constant 3 : index
    %c0_12 = arith.constant 0 : index
    %29 = vector.load %arg4[%c3, %c0_12] : memref<8x256xf32, #tpu.memory_space<vmem>>, vector<1x256xf32>
    %30 = vector.broadcast %29 : vector<1x256xf32> to vector<64x256xf32>
    %31 = arith.mulf %28, %30 : vector<64x256xf32>
    %32 = arith.addf %27, %31 : vector<64x256xf32>
    %33 = vector.extract_strided_slice %13 {offsets = [0, 1024], sizes = [64, 256], strides = [1, 1]} : vector<64x2048xf32> to vector<64x256xf32>
    %c4 = arith.constant 4 : index
    %c0_13 = arith.constant 0 : index
    %34 = vector.load %arg4[%c4, %c0_13] : memref<8x256xf32, #tpu.memory_space<vmem>>, vector<1x256xf32>
    %35 = vector.broadcast %34 : vector<1x256xf32> to vector<64x256xf32>
    %36 = arith.mulf %33, %35 : vector<64x256xf32>
    %37 = arith.addf %32, %36 : vector<64x256xf32>
    %38 = vector.extract_strided_slice %13 {offsets = [0, 1280], sizes = [64, 256], strides = [1, 1]} : vector<64x2048xf32> to vector<64x256xf32>
    %c5 = arith.constant 5 : index
    %c0_14 = arith.constant 0 : index
    %39 = vector.load %arg4[%c5, %c0_14] : memref<8x256xf32, #tpu.memory_space<vmem>>, vector<1x256xf32>
    %40 = vector.broadcast %39 : vector<1x256xf32> to vector<64x256xf32>
    %41 = arith.mulf %38, %40 : vector<64x256xf32>
    %42 = arith.addf %37, %41 : vector<64x256xf32>
    %43 = vector.extract_strided_slice %13 {offsets = [0, 1536], sizes = [64, 256], strides = [1, 1]} : vector<64x2048xf32> to vector<64x256xf32>
    %c6 = arith.constant 6 : index
    %c0_15 = arith.constant 0 : index
    %44 = vector.load %arg4[%c6, %c0_15] : memref<8x256xf32, #tpu.memory_space<vmem>>, vector<1x256xf32>
    %45 = vector.broadcast %44 : vector<1x256xf32> to vector<64x256xf32>
    %46 = arith.mulf %43, %45 : vector<64x256xf32>
    %47 = arith.addf %42, %46 : vector<64x256xf32>
    %48 = vector.extract_strided_slice %13 {offsets = [0, 1792], sizes = [64, 256], strides = [1, 1]} : vector<64x2048xf32> to vector<64x256xf32>
    %c7 = arith.constant 7 : index
    %c0_16 = arith.constant 0 : index
    %49 = vector.load %arg4[%c7, %c0_16] : memref<8x256xf32, #tpu.memory_space<vmem>>, vector<1x256xf32>
    %50 = vector.broadcast %49 : vector<1x256xf32> to vector<64x256xf32>
    %51 = arith.mulf %48, %50 : vector<64x256xf32>
    %52 = arith.addf %47, %51 : vector<64x256xf32>
    %c0_17 = arith.constant 0 : index
    %c0_18 = arith.constant 0 : index
    %53 = vector.load %arg5[%c0_17, %c0_18] : memref<1x256xf32, #tpu.memory_space<vmem>>, vector<1x256xf32>
    %54 = vector.broadcast %53 : vector<1x256xf32> to vector<64x256xf32>
    %55 = arith.addf %52, %54 : vector<64x256xf32>
    %56 = arith.negf %55 : vector<64x256xf32>
    %57 = math.exp %56 : vector<64x256xf32>
    %cst_19 = arith.constant 1.000000e+00 : f32
    %58 = vector.broadcast %cst_19 : f32 to vector<64x256xf32>
    %59 = arith.addf %58, %57 : vector<64x256xf32>
    %60 = arith.divf %58, %59 : vector<64x256xf32>
    %c0_20 = arith.constant 0 : index
    %c0_21 = arith.constant 0 : index
    %61 = vector.load %arg11[%c0_20, %c0_21] : memref<64x256xf32, #tpu.memory_space<vmem>>, vector<64x256xf32>
    tpu.vector_store %arg11[%c0_20, %c0_21], %60 {strides = array<i32>} : memref<64x256xf32, #tpu.memory_space<vmem>>, vector<64x256xf32>,
    %c0_22 = arith.constant 0 : index
    %c0_23 = arith.constant 0 : index
    %62 = vector.load %arg6[%c0_22, %c0_23] : memref<1x128xf32, #tpu.memory_space<vmem>>, vector<1x128xf32>
    %c0_24 = arith.constant 0 : index
    %c0_25 = arith.constant 0 : index
    %63 = vector.load %arg7[%c0_24, %c0_25] : memref<1x128xf32, #tpu.memory_space<vmem>>, vector<1x128xf32>
    %c0_26 = arith.constant 0 : index
    %c0_27 = arith.constant 0 : index
    %64 = vector.load %arg8[%c0_26, %c0_27] : memref<1x128xf32, #tpu.memory_space<vmem>>, vector<1x128xf32>
    %c0_28 = arith.constant 0 : index
    %c0_29 = arith.constant 0 : index
    %65 = vector.load %arg9[%c0_28, %c0_29] : memref<8x1xf32, #tpu.memory_space<vmem>>, vector<8x1xf32>
    %c0_30 = arith.constant 0 : index
    %c0_31 = arith.constant 0 : index
    %66 = vector.load %arg12[%c0_30, %c0_31] : memref<8x128xf32, #tpu.memory_space<vmem>>, vector<8x128xf32>
    %c0_32 = arith.constant 0 : index
    %c0_33 = arith.constant 0 : index
    %67 = vector.load %arg10[%c0_32, %c0_33] : memref<8x128xf32, #tpu.memory_space<vmem>>, vector<8x128xf32>
    %c0_i32_34 = arith.constant 0 : i32
    %c8_i32 = arith.constant 8 : i32
    %68 = arith.muli %c0_i32_34, %c8_i32 : i32
    %69 = tpu.assume_multiple %68, 8 : i32
    %70 = arith.index_cast %69 : i32 to index
    %c0_35 = arith.constant 0 : index
    %71 = vector.load %arg11[%70, %c0_35] : memref<64x256xf32, #tpu.memory_space<vmem>>, vector<8x256xf32>
    %72 = vector.extract_strided_slice %71 {offsets = [0, 0], sizes = [8, 128], strides = [1, 1]} : vector<8x256xf32> to vector<8x128xf32>
    %73 = vector.extract_strided_slice %71 {offsets = [0, 128], sizes = [8, 128], strides = [1, 1]} : vector<8x256xf32> to vector<8x128xf32>
    %c1_i32 = arith.constant 1 : i32
    %74 = tpu.dynamic_rotate %66 by %c1_i32 dim 1 : vector<8x128xf32>, i32 -> vector<8x128xf32>
    %c2_i32 = arith.constant 2 : i32
    %75 = tpu.dynamic_rotate %66 by %c2_i32 dim 1 : vector<8x128xf32>, i32 -> vector<8x128xf32>
    %76 = vector.broadcast %62 : vector<1x128xf32> to vector<8x128xf32>
    %77 = arith.mulf %74, %76 : vector<8x128xf32>
    %78 = arith.addf %66, %77 : vector<8x128xf32>
    %79 = vector.broadcast %63 : vector<1x128xf32> to vector<8x128xf32>
    %80 = arith.mulf %75, %79 : vector<8x128xf32>
    %81 = arith.addf %74, %80 : vector<8x128xf32>
    %82 = arith.mulf %81, %73 : vector<8x128xf32>
    %83 = vector.broadcast %64 : vector<1x128xf32> to vector<8x128xf32>
    %84 = arith.addf %82, %83 : vector<8x128xf32>
    %85 = arith.mulf %78, %72 : vector<8x128xf32>
    %86 = arith.addf %84, %85 : vector<8x128xf32>
    %c8_i32_36 = arith.constant 8 : i32
    %87 = arith.muli %arg0, %c8_i32_36 : i32
    %88 = arith.addi %87, %c0_i32_34 : i32
    %89 = arith.sitofp %88 : i32 to f32
    %90 = vector.broadcast %89 : f32 to vector<8x1xf32>
    %91 = arith.cmpf ogt, %65, %90 : vector<8x1xf32>
    %cst_37 = arith.constant 1.000000e+00 : f32
    %cst_38 = arith.constant 0.000000e+00 : f32
    %92 = vector.broadcast %cst_37 : f32 to vector<8x1xf32>
    %93 = vector.broadcast %cst_38 : f32 to vector<8x1xf32>
    %94 = arith.select %91, %92, %93 : vector<8x1xi1>, vector<8x1xf32>
    %95 = vector.broadcast %94 : vector<8x1xf32> to vector<8x128xf32>
    %96 = arith.mulf %95, %86 : vector<8x128xf32>
    %97 = arith.addf %67, %96 : vector<8x128xf32>
    %c1_i32_39 = arith.constant 1 : i32
    %c8_i32_40 = arith.constant 8 : i32
    %98 = arith.muli %c1_i32_39, %c8_i32_40 : i32
    %99 = tpu.assume_multiple %98, 8 : i32
    %100 = arith.index_cast %99 : i32 to index
    %c0_41 = arith.constant 0 : index
    %101 = vector.load %arg11[%100, %c0_41] : memref<64x256xf32, #tpu.memory_space<vmem>>, vector<8x256xf32>
    %102 = vector.extract_strided_slice %101 {offsets = [0, 0], sizes = [8, 128], strides = [1, 1]} : vector<8x256xf32> to vector<8x128xf32>
    %103 = vector.extract_strided_slice %101 {offsets = [0, 128], sizes = [8, 128], strides = [1, 1]} : vector<8x256xf32> to vector<8x128xf32>
    %c1_i32_42 = arith.constant 1 : i32
    %104 = tpu.dynamic_rotate %86 by %c1_i32_42 dim 1 : vector<8x128xf32>, i32 -> vector<8x128xf32>
    %c2_i32_43 = arith.constant 2 : i32
    %105 = tpu.dynamic_rotate %86 by %c2_i32_43 dim 1 : vector<8x128xf32>, i32 -> vector<8x128xf32>
    %106 = vector.broadcast %62 : vector<1x128xf32> to vector<8x128xf32>
    %107 = arith.mulf %104, %106 : vector<8x128xf32>
    %108 = arith.addf %86, %107 : vector<8x128xf32>
    %109 = vector.broadcast %63 : vector<1x128xf32> to vector<8x128xf32>
    %110 = arith.mulf %105, %109 : vector<8x128xf32>
    %111 = arith.addf %104, %110 : vector<8x128xf32>
    %112 = arith.mulf %111, %103 : vector<8x128xf32>
    %113 = vector.broadcast %64 : vector<1x128xf32> to vector<8x128xf32>
    %114 = arith.addf %112, %113 : vector<8x128xf32>
    %115 = arith.mulf %108, %102 : vector<8x128xf32>
    %116 = arith.addf %114, %115 : vector<8x128xf32>
    %c8_i32_44 = arith.constant 8 : i32
    %117 = arith.muli %arg0, %c8_i32_44 : i32
    %118 = arith.addi %117, %c1_i32_39 : i32
    %119 = arith.sitofp %118 : i32 to f32
    %120 = vector.broadcast %119 : f32 to vector<8x1xf32>
    %121 = arith.cmpf ogt, %65, %120 : vector<8x1xf32>
    %cst_45 = arith.constant 1.000000e+00 : f32
    %cst_46 = arith.constant 0.000000e+00 : f32
    %122 = vector.broadcast %cst_45 : f32 to vector<8x1xf32>
    %123 = vector.broadcast %cst_46 : f32 to vector<8x1xf32>
    %124 = arith.select %121, %122, %123 : vector<8x1xi1>, vector<8x1xf32>
    %125 = vector.broadcast %124 : vector<8x1xf32> to vector<8x128xf32>
    %126 = arith.mulf %125, %116 : vector<8x128xf32>
    %127 = arith.addf %97, %126 : vector<8x128xf32>
    %c2_i32_47 = arith.constant 2 : i32
    %c8_i32_48 = arith.constant 8 : i32
    %128 = arith.muli %c2_i32_47, %c8_i32_48 : i32
    %129 = tpu.assume_multiple %128, 8 : i32
    %130 = arith.index_cast %129 : i32 to index
    %c0_49 = arith.constant 0 : index
    %131 = vector.load %arg11[%130, %c0_49] : memref<64x256xf32, #tpu.memory_space<vmem>>, vector<8x256xf32>
    %132 = vector.extract_strided_slice %131 {offsets = [0, 0], sizes = [8, 128], strides = [1, 1]} : vector<8x256xf32> to vector<8x128xf32>
    %133 = vector.extract_strided_slice %131 {offsets = [0, 128], sizes = [8, 128], strides = [1, 1]} : vector<8x256xf32> to vector<8x128xf32>
    %c1_i32_50 = arith.constant 1 : i32
    %134 = tpu.dynamic_rotate %116 by %c1_i32_50 dim 1 : vector<8x128xf32>, i32 -> vector<8x128xf32>
    %c2_i32_51 = arith.constant 2 : i32
    %135 = tpu.dynamic_rotate %116 by %c2_i32_51 dim 1 : vector<8x128xf32>, i32 -> vector<8x128xf32>
    %136 = vector.broadcast %62 : vector<1x128xf32> to vector<8x128xf32>
    %137 = arith.mulf %134, %136 : vector<8x128xf32>
    %138 = arith.addf %116, %137 : vector<8x128xf32>
    %139 = vector.broadcast %63 : vector<1x128xf32> to vector<8x128xf32>
    %140 = arith.mulf %135, %139 : vector<8x128xf32>
    %141 = arith.addf %134, %140 : vector<8x128xf32>
    %142 = arith.mulf %141, %133 : vector<8x128xf32>
    %143 = vector.broadcast %64 : vector<1x128xf32> to vector<8x128xf32>
    %144 = arith.addf %142, %143 : vector<8x128xf32>
    %145 = arith.mulf %138, %132 : vector<8x128xf32>
    %146 = arith.addf %144, %145 : vector<8x128xf32>
    %c8_i32_52 = arith.constant 8 : i32
    %147 = arith.muli %arg0, %c8_i32_52 : i32
    %148 = arith.addi %147, %c2_i32_47 : i32
    %149 = arith.sitofp %148 : i32 to f32
    %150 = vector.broadcast %149 : f32 to vector<8x1xf32>
    %151 = arith.cmpf ogt, %65, %150 : vector<8x1xf32>
    %cst_53 = arith.constant 1.000000e+00 : f32
    %cst_54 = arith.constant 0.000000e+00 : f32
    %152 = vector.broadcast %cst_53 : f32 to vector<8x1xf32>
    %153 = vector.broadcast %cst_54 : f32 to vector<8x1xf32>
    %154 = arith.select %151, %152, %153 : vector<8x1xi1>, vector<8x1xf32>
    %155 = vector.broadcast %154 : vector<8x1xf32> to vector<8x128xf32>
    %156 = arith.mulf %155, %146 : vector<8x128xf32>
    %157 = arith.addf %127, %156 : vector<8x128xf32>
    %c3_i32 = arith.constant 3 : i32
    %c8_i32_55 = arith.constant 8 : i32
    %158 = arith.muli %c3_i32, %c8_i32_55 : i32
    %159 = tpu.assume_multiple %158, 8 : i32
    %160 = arith.index_cast %159 : i32 to index
    %c0_56 = arith.constant 0 : index
    %161 = vector.load %arg11[%160, %c0_56] : memref<64x256xf32, #tpu.memory_space<vmem>>, vector<8x256xf32>
    %162 = vector.extract_strided_slice %161 {offsets = [0, 0], sizes = [8, 128], strides = [1, 1]} : vector<8x256xf32> to vector<8x128xf32>
    %163 = vector.extract_strided_slice %161 {offsets = [0, 128], sizes = [8, 128], strides = [1, 1]} : vector<8x256xf32> to vector<8x128xf32>
    %c1_i32_57 = arith.constant 1 : i32
    %164 = tpu.dynamic_rotate %146 by %c1_i32_57 dim 1 : vector<8x128xf32>, i32 -> vector<8x128xf32>
    %c2_i32_58 = arith.constant 2 : i32
    %165 = tpu.dynamic_rotate %146 by %c2_i32_58 dim 1 : vector<8x128xf32>, i32 -> vector<8x128xf32>
    %166 = vector.broadcast %62 : vector<1x128xf32> to vector<8x128xf32>
    %167 = arith.mulf %164, %166 : vector<8x128xf32>
    %168 = arith.addf %146, %167 : vector<8x128xf32>
    %169 = vector.broadcast %63 : vector<1x128xf32> to vector<8x128xf32>
    %170 = arith.mulf %165, %169 : vector<8x128xf32>
    %171 = arith.addf %164, %170 : vector<8x128xf32>
    %172 = arith.mulf %171, %163 : vector<8x128xf32>
    %173 = vector.broadcast %64 : vector<1x128xf32> to vector<8x128xf32>
    %174 = arith.addf %172, %173 : vector<8x128xf32>
    %175 = arith.mulf %168, %162 : vector<8x128xf32>
    %176 = arith.addf %174, %175 : vector<8x128xf32>
    %c8_i32_59 = arith.constant 8 : i32
    %177 = arith.muli %arg0, %c8_i32_59 : i32
    %178 = arith.addi %177, %c3_i32 : i32
    %179 = arith.sitofp %178 : i32 to f32
    %180 = vector.broadcast %179 : f32 to vector<8x1xf32>
    %181 = arith.cmpf ogt, %65, %180 : vector<8x1xf32>
    %cst_60 = arith.constant 1.000000e+00 : f32
    %cst_61 = arith.constant 0.000000e+00 : f32
    %182 = vector.broadcast %cst_60 : f32 to vector<8x1xf32>
    %183 = vector.broadcast %cst_61 : f32 to vector<8x1xf32>
    %184 = arith.select %181, %182, %183 : vector<8x1xi1>, vector<8x1xf32>
    %185 = vector.broadcast %184 : vector<8x1xf32> to vector<8x128xf32>
    %186 = arith.mulf %185, %176 : vector<8x128xf32>
    %187 = arith.addf %157, %186 : vector<8x128xf32>
    %c4_i32 = arith.constant 4 : i32
    %c8_i32_62 = arith.constant 8 : i32
    %188 = arith.muli %c4_i32, %c8_i32_62 : i32
    %189 = tpu.assume_multiple %188, 8 : i32
    %190 = arith.index_cast %189 : i32 to index
    %c0_63 = arith.constant 0 : index
    %191 = vector.load %arg11[%190, %c0_63] : memref<64x256xf32, #tpu.memory_space<vmem>>, vector<8x256xf32>
    %192 = vector.extract_strided_slice %191 {offsets = [0, 0], sizes = [8, 128], strides = [1, 1]} : vector<8x256xf32> to vector<8x128xf32>
    %193 = vector.extract_strided_slice %191 {offsets = [0, 128], sizes = [8, 128], strides = [1, 1]} : vector<8x256xf32> to vector<8x128xf32>
    %c1_i32_64 = arith.constant 1 : i32
    %194 = tpu.dynamic_rotate %176 by %c1_i32_64 dim 1 : vector<8x128xf32>, i32 -> vector<8x128xf32>
    %c2_i32_65 = arith.constant 2 : i32
    %195 = tpu.dynamic_rotate %176 by %c2_i32_65 dim 1 : vector<8x128xf32>, i32 -> vector<8x128xf32>
    %196 = vector.broadcast %62 : vector<1x128xf32> to vector<8x128xf32>
    %197 = arith.mulf %194, %196 : vector<8x128xf32>
    %198 = arith.addf %176, %197 : vector<8x128xf32>
    %199 = vector.broadcast %63 : vector<1x128xf32> to vector<8x128xf32>
    %200 = arith.mulf %195, %199 : vector<8x128xf32>
    %201 = arith.addf %194, %200 : vector<8x128xf32>
    %202 = arith.mulf %201, %193 : vector<8x128xf32>
    %203 = vector.broadcast %64 : vector<1x128xf32> to vector<8x128xf32>
    %204 = arith.addf %202, %203 : vector<8x128xf32>
    %205 = arith.mulf %198, %192 : vector<8x128xf32>
    %206 = arith.addf %204, %205 : vector<8x128xf32>
    %c8_i32_66 = arith.constant 8 : i32
    %207 = arith.muli %arg0, %c8_i32_66 : i32
    %208 = arith.addi %207, %c4_i32 : i32
    %209 = arith.sitofp %208 : i32 to f32
    %210 = vector.broadcast %209 : f32 to vector<8x1xf32>
    %211 = arith.cmpf ogt, %65, %210 : vector<8x1xf32>
    %cst_67 = arith.constant 1.000000e+00 : f32
    %cst_68 = arith.constant 0.000000e+00 : f32
    %212 = vector.broadcast %cst_67 : f32 to vector<8x1xf32>
    %213 = vector.broadcast %cst_68 : f32 to vector<8x1xf32>
    %214 = arith.select %211, %212, %213 : vector<8x1xi1>, vector<8x1xf32>
    %215 = vector.broadcast %214 : vector<8x1xf32> to vector<8x128xf32>
    %216 = arith.mulf %215, %206 : vector<8x128xf32>
    %217 = arith.addf %187, %216 : vector<8x128xf32>
    %c5_i32 = arith.constant 5 : i32
    %c8_i32_69 = arith.constant 8 : i32
    %218 = arith.muli %c5_i32, %c8_i32_69 : i32
    %219 = tpu.assume_multiple %218, 8 : i32
    %220 = arith.index_cast %219 : i32 to index
    %c0_70 = arith.constant 0 : index
    %221 = vector.load %arg11[%220, %c0_70] : memref<64x256xf32, #tpu.memory_space<vmem>>, vector<8x256xf32>
    %222 = vector.extract_strided_slice %221 {offsets = [0, 0], sizes = [8, 128], strides = [1, 1]} : vector<8x256xf32> to vector<8x128xf32>
    %223 = vector.extract_strided_slice %221 {offsets = [0, 128], sizes = [8, 128], strides = [1, 1]} : vector<8x256xf32> to vector<8x128xf32>
    %c1_i32_71 = arith.constant 1 : i32
    %224 = tpu.dynamic_rotate %206 by %c1_i32_71 dim 1 : vector<8x128xf32>, i32 -> vector<8x128xf32>
    %c2_i32_72 = arith.constant 2 : i32
    %225 = tpu.dynamic_rotate %206 by %c2_i32_72 dim 1 : vector<8x128xf32>, i32 -> vector<8x128xf32>
    %226 = vector.broadcast %62 : vector<1x128xf32> to vector<8x128xf32>
    %227 = arith.mulf %224, %226 : vector<8x128xf32>
    %228 = arith.addf %206, %227 : vector<8x128xf32>
    %229 = vector.broadcast %63 : vector<1x128xf32> to vector<8x128xf32>
    %230 = arith.mulf %225, %229 : vector<8x128xf32>
    %231 = arith.addf %224, %230 : vector<8x128xf32>
    %232 = arith.mulf %231, %223 : vector<8x128xf32>
    %233 = vector.broadcast %64 : vector<1x128xf32> to vector<8x128xf32>
    %234 = arith.addf %232, %233 : vector<8x128xf32>
    %235 = arith.mulf %228, %222 : vector<8x128xf32>
    %236 = arith.addf %234, %235 : vector<8x128xf32>
    %c8_i32_73 = arith.constant 8 : i32
    %237 = arith.muli %arg0, %c8_i32_73 : i32
    %238 = arith.addi %237, %c5_i32 : i32
    %239 = arith.sitofp %238 : i32 to f32
    %240 = vector.broadcast %239 : f32 to vector<8x1xf32>
    %241 = arith.cmpf ogt, %65, %240 : vector<8x1xf32>
    %cst_74 = arith.constant 1.000000e+00 : f32
    %cst_75 = arith.constant 0.000000e+00 : f32
    %242 = vector.broadcast %cst_74 : f32 to vector<8x1xf32>
    %243 = vector.broadcast %cst_75 : f32 to vector<8x1xf32>
    %244 = arith.select %241, %242, %243 : vector<8x1xi1>, vector<8x1xf32>
    %245 = vector.broadcast %244 : vector<8x1xf32> to vector<8x128xf32>
    %246 = arith.mulf %245, %236 : vector<8x128xf32>
    %247 = arith.addf %217, %246 : vector<8x128xf32>
    %c6_i32 = arith.constant 6 : i32
    %c8_i32_76 = arith.constant 8 : i32
    %248 = arith.muli %c6_i32, %c8_i32_76 : i32
    %249 = tpu.assume_multiple %248, 8 : i32
    %250 = arith.index_cast %249 : i32 to index
    %c0_77 = arith.constant 0 : index
    %251 = vector.load %arg11[%250, %c0_77] : memref<64x256xf32, #tpu.memory_space<vmem>>, vector<8x256xf32>
    %252 = vector.extract_strided_slice %251 {offsets = [0, 0], sizes = [8, 128], strides = [1, 1]} : vector<8x256xf32> to vector<8x128xf32>
    %253 = vector.extract_strided_slice %251 {offsets = [0, 128], sizes = [8, 128], strides = [1, 1]} : vector<8x256xf32> to vector<8x128xf32>
    %c1_i32_78 = arith.constant 1 : i32
    %254 = tpu.dynamic_rotate %236 by %c1_i32_78 dim 1 : vector<8x128xf32>, i32 -> vector<8x128xf32>
    %c2_i32_79 = arith.constant 2 : i32
    %255 = tpu.dynamic_rotate %236 by %c2_i32_79 dim 1 : vector<8x128xf32>, i32 -> vector<8x128xf32>
    %256 = vector.broadcast %62 : vector<1x128xf32> to vector<8x128xf32>
    %257 = arith.mulf %254, %256 : vector<8x128xf32>
    %258 = arith.addf %236, %257 : vector<8x128xf32>
    %259 = vector.broadcast %63 : vector<1x128xf32> to vector<8x128xf32>
    %260 = arith.mulf %255, %259 : vector<8x128xf32>
    %261 = arith.addf %254, %260 : vector<8x128xf32>
    %262 = arith.mulf %261, %253 : vector<8x128xf32>
    %263 = vector.broadcast %64 : vector<1x128xf32> to vector<8x128xf32>
    %264 = arith.addf %262, %263 : vector<8x128xf32>
    %265 = arith.mulf %258, %252 : vector<8x128xf32>
    %266 = arith.addf %264, %265 : vector<8x128xf32>
    %c8_i32_80 = arith.constant 8 : i32
    %267 = arith.muli %arg0, %c8_i32_80 : i32
    %268 = arith.addi %267, %c6_i32 : i32
    %269 = arith.sitofp %268 : i32 to f32
    %270 = vector.broadcast %269 : f32 to vector<8x1xf32>
    %271 = arith.cmpf ogt, %65, %270 : vector<8x1xf32>
    %cst_81 = arith.constant 1.000000e+00 : f32
    %cst_82 = arith.constant 0.000000e+00 : f32
    %272 = vector.broadcast %cst_81 : f32 to vector<8x1xf32>
    %273 = vector.broadcast %cst_82 : f32 to vector<8x1xf32>
    %274 = arith.select %271, %272, %273 : vector<8x1xi1>, vector<8x1xf32>
    %275 = vector.broadcast %274 : vector<8x1xf32> to vector<8x128xf32>
    %276 = arith.mulf %275, %266 : vector<8x128xf32>
    %277 = arith.addf %247, %276 : vector<8x128xf32>
    %c7_i32 = arith.constant 7 : i32
    %c8_i32_83 = arith.constant 8 : i32
    %278 = arith.muli %c7_i32, %c8_i32_83 : i32
    %279 = tpu.assume_multiple %278, 8 : i32
    %280 = arith.index_cast %279 : i32 to index
    %c0_84 = arith.constant 0 : index
    %281 = vector.load %arg11[%280, %c0_84] : memref<64x256xf32, #tpu.memory_space<vmem>>, vector<8x256xf32>
    %282 = vector.extract_strided_slice %281 {offsets = [0, 0], sizes = [8, 128], strides = [1, 1]} : vector<8x256xf32> to vector<8x128xf32>
    %283 = vector.extract_strided_slice %281 {offsets = [0, 128], sizes = [8, 128], strides = [1, 1]} : vector<8x256xf32> to vector<8x128xf32>
    %c1_i32_85 = arith.constant 1 : i32
    %284 = tpu.dynamic_rotate %266 by %c1_i32_85 dim 1 : vector<8x128xf32>, i32 -> vector<8x128xf32>
    %c2_i32_86 = arith.constant 2 : i32
    %285 = tpu.dynamic_rotate %266 by %c2_i32_86 dim 1 : vector<8x128xf32>, i32 -> vector<8x128xf32>
    %286 = vector.broadcast %62 : vector<1x128xf32> to vector<8x128xf32>
    %287 = arith.mulf %284, %286 : vector<8x128xf32>
    %288 = arith.addf %266, %287 : vector<8x128xf32>
    %289 = vector.broadcast %63 : vector<1x128xf32> to vector<8x128xf32>
    %290 = arith.mulf %285, %289 : vector<8x128xf32>
    %291 = arith.addf %284, %290 : vector<8x128xf32>
    %292 = arith.mulf %291, %283 : vector<8x128xf32>
    %293 = vector.broadcast %64 : vector<1x128xf32> to vector<8x128xf32>
    %294 = arith.addf %292, %293 : vector<8x128xf32>
    %295 = arith.mulf %288, %282 : vector<8x128xf32>
    %296 = arith.addf %294, %295 : vector<8x128xf32>
    %c8_i32_87 = arith.constant 8 : i32
    %297 = arith.muli %arg0, %c8_i32_87 : i32
    %298 = arith.addi %297, %c7_i32 : i32
    %299 = arith.sitofp %298 : i32 to f32
    %300 = vector.broadcast %299 : f32 to vector<8x1xf32>
    %301 = arith.cmpf ogt, %65, %300 : vector<8x1xf32>
    %cst_88 = arith.constant 1.000000e+00 : f32
    %cst_89 = arith.constant 0.000000e+00 : f32
    %302 = vector.broadcast %cst_88 : f32 to vector<8x1xf32>
    %303 = vector.broadcast %cst_89 : f32 to vector<8x1xf32>
    %304 = arith.select %301, %302, %303 : vector<8x1xi1>, vector<8x1xf32>
    %305 = vector.broadcast %304 : vector<8x1xf32> to vector<8x128xf32>
    %306 = arith.mulf %305, %296 : vector<8x128xf32>
    %307 = arith.addf %277, %306 : vector<8x128xf32>
    %c8_i32_90 = arith.constant 8 : i32
    %c0_91 = arith.constant 0 : index
    %c0_92 = arith.constant 0 : index
    %308 = vector.load %arg12[%c0_91, %c0_92] : memref<8x128xf32, #tpu.memory_space<vmem>>, vector<8x128xf32>
    tpu.vector_store %arg12[%c0_91, %c0_92], %296 {strides = array<i32>} : memref<8x128xf32, #tpu.memory_space<vmem>>, vector<8x128xf32>,
    %c0_93 = arith.constant 0 : index
    %c0_94 = arith.constant 0 : index
    %309 = vector.load %arg10[%c0_93, %c0_94] : memref<8x128xf32, #tpu.memory_space<vmem>>, vector<8x128xf32>
    tpu.vector_store %arg10[%c0_93, %c0_94], %307 {strides = array<i32>} : memref<8x128xf32, #tpu.memory_space<vmem>>, vector<8x128xf32>,
    return
  }
  func.func @transform_0(%arg0: i32) -> (i32, i32) {
    %c0_i32 = arith.constant 0 : i32
    %c0_i32_0 = arith.constant 0 : i32
    return %arg0, %c0_i32 : i32, i32
  }
  func.func @transform_1(%arg0: i32) -> (i32, i32) {
    %c0_i32 = arith.constant 0 : i32
    %c0_i32_0 = arith.constant 0 : i32
    %c0_i32_1 = arith.constant 0 : i32
    return %c0_i32, %c0_i32_0 : i32, i32
  }
  func.func @transform_2(%arg0: i32) -> (i32, i32) {
    %c0_i32 = arith.constant 0 : i32
    %c0_i32_0 = arith.constant 0 : i32
    %c0_i32_1 = arith.constant 0 : i32
    return %c0_i32, %c0_i32_0 : i32, i32
  }
  func.func @transform_3(%arg0: i32) -> (i32, i32) {
    %c0_i32 = arith.constant 0 : i32
    %c0_i32_0 = arith.constant 0 : i32
    %c0_i32_1 = arith.constant 0 : i32
    return %c0_i32, %c0_i32_0 : i32, i32
  }
  func.func @transform_4(%arg0: i32) -> (i32, i32) {
    %c0_i32 = arith.constant 0 : i32
    %c0_i32_0 = arith.constant 0 : i32
    %c0_i32_1 = arith.constant 0 : i32
    return %c0_i32, %c0_i32_0 : i32, i32
  }
  func.func @transform_5(%arg0: i32) -> (i32, i32) {
    %c0_i32 = arith.constant 0 : i32
    %c0_i32_0 = arith.constant 0 : i32
    %c0_i32_1 = arith.constant 0 : i32
    return %c0_i32, %c0_i32_0 : i32, i32
  }
  func.func @transform_6(%arg0: i32) -> (i32, i32) {
    %c0_i32 = arith.constant 0 : i32
    %c0_i32_0 = arith.constant 0 : i32
    %c0_i32_1 = arith.constant 0 : i32
    return %c0_i32, %c0_i32_0 : i32, i32
  }
  func.func @transform_7(%arg0: i32) -> (i32, i32) {
    %c0_i32 = arith.constant 0 : i32
    %c0_i32_0 = arith.constant 0 : i32
    %c0_i32_1 = arith.constant 0 : i32
    return %c0_i32, %c0_i32_0 : i32, i32
  }
  func.func @transform_8(%arg0: i32) -> (i32, i32) {
    %c0_i32 = arith.constant 0 : i32
    %c0_i32_0 = arith.constant 0 : i32
    %c0_i32_1 = arith.constant 0 : i32
    return %c0_i32, %c0_i32_0 : i32, i32
  }
  func.func @transform_9(%arg0: i32) -> (i32, i32) {
    %c0_i32 = arith.constant 0 : i32
    %c0_i32_0 = arith.constant 0 : i32
    %c0_i32_1 = arith.constant 0 : i32
    return %c0_i32, %c0_i32_0 : i32, i32
  }
}

</mosaic_0001>

<llo_original>
// kernel: tpu_custom_call.1
$region0: #{tpu_custom_call.1}
  #allocation0 [shape = 'u32[]', space=smem, size = 0x4, offset = 0x4, fixed_abs, tag = 'smem constant byte address 0x4 - core index']
  #allocation1 [shape = 'u32[144,128]{1,0:T(1,128)}', space=vmem, size = 0x12000, scoped, tag = 'internal scratch']
  #allocation2 [shape = 'f32[64,256]{1,0:T(8,128)}', space=vmem, size = 0x10000, scoped, tag = 'scratch operand']
  #allocation3 [shape = 'f32[8,128]{1,0:T(8,128)}', space=vmem, size = 0x1000, scoped, tag = 'scratch operand']
  %s0 = inlined_call_operand.vmem [shape: f32[64,16], index: 0, kind: input, shape index: {}]
  %s1 = inlined_call_operand.hbm [shape: f32[16,2048], index: 1, kind: input, shape index: {}]
  %s2 = inlined_call_operand.vmem [shape: f32[1,2048], index: 2, kind: input, shape index: {}]
  %s3 = inlined_call_operand.vmem [shape: f32[8,256], index: 3, kind: input, shape index: {}]
  %s4 = inlined_call_operand.vmem [shape: f32[1,256], index: 4, kind: input, shape index: {}]
  %s5 = inlined_call_operand.vmem [shape: f32[1,128], index: 5, kind: input, shape index: {}]
  %s6 = inlined_call_operand.vmem [shape: f32[1,128], index: 6, kind: input, shape index: {}]
  %s7 = inlined_call_operand.vmem [shape: f32[1,128], index: 7, kind: input, shape index: {}]
  %s8 = inlined_call_operand.vmem [shape: f32[8,1], index: 8, kind: input, shape index: {}]
  %s9 = inlined_call_operand.hbm [shape: f32[8,128], index: 9, kind: output, shape index: {}]
  %s10 = sld [smem:[#allocation0]]
  $region54: #{tpu_custom_call.1} parent=0
    _
  %s12 = ssub.s32 1, %s10
  %s13 = scalar_select 0, %s12, %s10
  $region1: #{tpu_custom_call.1} parent=0
    #allocation4 [shape = 'u8[131072]{0}', space=vmem, size = 0x20000, scoped, tag = 'input window, operand 1, single buffered']
    #allocation5 [shape = 's32[1]{0}', space=sflag, size = 0x4, scoped, tag = 'scoped memory for tpu_custom_call.1']
    #allocation6 [shape = 's32[1]{0}', space=sflag, size = 0x4, scoped, tag = 'scoped memory for tpu_custom_call.1']
    #allocation7 [shape = 'u8[4096]{0}', space=vmem, size = 0x1000, scoped, tag = 'output window, operand 0, single buffered']
    %14 = vsyncpa [#allocation5], 0
    %15 = vsyncpa [#allocation6], 0
    // Predicated region
    $region2: #{tpu_custom_call.1} parent=1 // pred_check
      _
    $region3: #{tpu_custom_call.1} parent=1 // pred_check_branch
      %17 = sbr.rel (0) target = $region5
    $region4: #{tpu_custom_call.1} parent=1 // pred_region
      _
    $region5: #{tpu_custom_call.1} parent=1 // pred_fallthru
      _
    // Predicated region
    $region6: #{tpu_custom_call.1} parent=1 // pred_check
      _
    $region7: #{tpu_custom_call.1} parent=1 // pred_check_branch
      %19 = sbr.rel (0) target = $region9
    $region8: #{tpu_custom_call.1} parent=1 // pred_region
      %s21 = ssub.s32 4096, 4096
      %22 = vsyncadd [#allocation5], %s21
      %s23 = sshll.u32 [#allocation4], 4
      %s24 = int_to_ptr.vmem [resolvable:$true] %s23
      %29 = dma.hbm_to_vmem [thread:$0]  %s1, 4096, %s24, [#allocation5], 2048, 2048, 128
    $region9: #{tpu_custom_call.1} parent=1 // pred_fallthru
      _
    // Predicated region
    $region10: #{tpu_custom_call.1} parent=1 // pred_check
      _
    $region11: #{tpu_custom_call.1} parent=1 // pred_check_branch
      %31 = sbr.rel (0) target = $region13
    $region12: #{tpu_custom_call.1} parent=1 // pred_region
      _
    $region13: #{tpu_custom_call.1} parent=1 // pred_fallthru
      _
    // Predicated region
    $region14: #{tpu_custom_call.1} parent=1 // pred_check
      _
    $region15: #{tpu_custom_call.1} parent=1 // pred_check_branch
      %33 = sbr.rel (0) target = $region17
    $region16: #{tpu_custom_call.1} parent=1 // pred_region
      _
    $region17: #{tpu_custom_call.1} parent=1 // pred_fallthru
      _
    // Predicated region
    $region18: #{tpu_custom_call.1} parent=1 // pred_check
      _
    $region19: #{tpu_custom_call.1} parent=1 // pred_check_branch
      %35 = sbr.rel (0) target = $region21
    $region20: #{tpu_custom_call.1} parent=1 // pred_region
      _
    $region21: #{tpu_custom_call.1} parent=1 // pred_fallthru
      _
    // Predicated region
    $region22: #{tpu_custom_call.1} parent=1 // pred_check
      _
    $region23: #{tpu_custom_call.1} parent=1 // pred_check_branch
      %37 = sbr.rel (0) target = $region25
    $region24: #{tpu_custom_call.1} parent=1 // pred_region
      _
    $region25: #{tpu_custom_call.1} parent=1 // pred_fallthru
      _
    // Predicated region
    $region26: #{tpu_custom_call.1} parent=1 // pred_check
      _
    $region27: #{tpu_custom_call.1} parent=1 // pred_check_branch
      %39 = sbr.rel (0) target = $region29
    $region28: #{tpu_custom_call.1} parent=1 // pred_region
      _
    $region29: #{tpu_custom_call.1} parent=1 // pred_fallthru
      _
    // Predicated region
    $region30: #{tpu_custom_call.1} parent=1 // pred_check
      _
    $region31: #{tpu_custom_call.1} parent=1 // pred_check_branch
      %41 = sbr.rel (0) target = $region33
    $region32: #{tpu_custom_call.1} parent=1 // pred_region
      _
    $region33: #{tpu_custom_call.1} parent=1 // pred_fallthru
      _
    // Predicated region
    $region34: #{tpu_custom_call.1} parent=1 // pred_check
      _
    $region35: #{tpu_custom_call.1} parent=1 // pred_check_branch
      %43 = sbr.rel (0) target = $region37
    $region36: #{tpu_custom_call.1} parent=1 // pred_region
      _
    $region37: #{tpu_custom_call.1} parent=1 // pred_fallthru
      _
    // Predicated region
    $region38: #{tpu_custom_call.1} parent=1 // pred_check
      _
    $region39: #{tpu_custom_call.1} parent=1 // pred_check_branch
      %45 = sbr.rel (0) target = $region41
    $region40: #{tpu_custom_call.1} parent=1 // pred_region
      %46 = dma.done [#allocation5], 4096
    $region41: #{tpu_custom_call.1} parent=1 // pred_fallthru
      _
    %p47 = scmp.eq.s32.totalorder 0, 0
    // Predicated region
    $region42: #{tpu_custom_call.1} parent=1 // pred_check
      %p48 = pneg %p47
    $region43: #{tpu_custom_call.1} parent=1 // pred_check_branch
      %50 = sbr.rel (%p48) target = $region45
    $region44: #{tpu_custom_call.1} parent=1 // pred_region
      %v51 = vld [vmem:[%s7] sm:$0x1]
      %v53 = vlaneseq
      %v54 = vshrl.u32 %v53, 7
      %v55 = vsub.s32 0, %v54
      %v56 = vrot.slane %v51, %v55
      %v58 = vadd.f32 %v56, 0.0
      %59 = vst [vmem:[#allocation3] sm:$0xff] %v58
      %60 = vst [vmem:[#allocation7] sm:$0xff] 0.0
    $region45: #{tpu_custom_call.1} parent=1 // pred_fallthru
      _
    %v61 = vld [vmem:[%s0] sm:$0xff]
    %v62 = vld [vmem:[%s0 + $0x8] sm:$0xff]
    %v63 = vld [vmem:[%s0 + $0x10] sm:$0xff]
    %v64 = vld [vmem:[%s0 + $0x18] sm:$0xff]
    %v65 = vld [vmem:[%s0 + $0x20] sm:$0xff]
    %v66 = vld [vmem:[%s0 + $0x28] sm:$0xff]
    %v67 = vld [vmem:[%s0 + $0x30] sm:$0xff]
    %v68 = vld [vmem:[%s0 + $0x38] sm:$0xff]
    %v69 = vld [vmem:[#allocation4] sm:$0xff]
    %v70 = vld [vmem:[#allocation4 + $0x8] sm:$0xff]
    %v71 = vld [vmem:[#allocation4 + $0x10] sm:$0xff]
    %v72 = vld [vmem:[#allocation4 + $0x18] sm:$0xff]
    %v73 = vld [vmem:[#allocation4 + $0x20] sm:$0xff]
    %v74 = vld [vmem:[#allocation4 + $0x28] sm:$0xff]
    %v75 = vld [vmem:[#allocation4 + $0x30] sm:$0xff]
    %v76 = vld [vmem:[#allocation4 + $0x38] sm:$0xff]
    %v77 = vld [vmem:[#allocation4 + $0x40] sm:$0xff]
    %v78 = vld [vmem:[#allocation4 + $0x48] sm:$0xff]
    %v79 = vld [vmem:[#allocation4 + $0x50] sm:$0xff]
    %v80 = vld [vmem:[#allocation4 + $0x58] sm:$0xff]
    %v81 = vld [vmem:[#allocation4 + $0x60] sm:$0xff]
    %v82 = vld [vmem:[#allocation4 + $0x68] sm:$0xff]
    %v83 = vld [vmem:[#allocation4 + $0x70] sm:$0xff]
    %v84 = vld [vmem:[#allocation4 + $0x78] sm:$0xff]
    %v85 = vld [vmem:[#allocation4 + $0x80] sm:$0xff]
    %v86 = vld [vmem:[#allocation4 + $0x88] sm:$0xff]
    %v87 = vld [vmem:[#allocation4 + $0x90] sm:$0xff]
    %v88 = vld [vmem:[#allocation4 + $0x98] sm:$0xff]
    %v89 = vld [vmem:[#allocation4 + $0xa0] sm:$0xff]
    %v90 = vld [vmem:[#allocation4 + $0xa8] sm:$0xff]
    %v91 = vld [vmem:[#allocation4 + $0xb0] sm:$0xff]
    %v92 = vld [vmem:[#allocation4 + $0xb8] sm:$0xff]
    %v93 = vld [vmem:[#allocation4 + $0xc0] sm:$0xff]
    %v94 = vld [vmem:[#allocation4 + $0xc8] sm:$0xff]
    %v95 = vld [vmem:[#allocation4 + $0xd0] sm:$0xff]
    %v96 = vld [vmem:[#allocation4 + $0xd8] sm:$0xff]
    %v97 = vld [vmem:[#allocation4 + $0xe0] sm:$0xff]
    %v98 = vld [vmem:[#allocation4 + $0xe8] sm:$0xff]
    %v99 = vld [vmem:[#allocation4 + $0xf0] sm:$0xff]
    %v100 = vld [vmem:[#allocation4 + $0xf8] sm:$0xff]
    %v101 = vld [vmem:[%s2] sm:$0xff]
    %v102 = vld [vmem:[%s2 + $0x8] sm:$0xff]
    %v105 = vlaneseq
    %v106 = vshrl.u32 %v105, 7
    %v107 = vsub.s32 0, %v106
    %v108 = vrot.slane %v101, %v107
    %v109 = vlaneseq
    %v110 = vshrl.u32 %v109, 7
    %v111 = vsub.s32 1, %v110
    %v112 = vrot.slane %v101, %v111
    %v113 = vlaneseq
    %v114 = vshrl.u32 %v113, 7
    %v115 = vsub.s32 2, %v114
    %v116 = vrot.slane %v101, %v115
    %v117 = vlaneseq
    %v118 = vshrl.u32 %v117, 7
    %v119 = vsub.s32 3, %v118
    %v120 = vrot.slane %v101, %v119
    %v121 = vlaneseq
    %v122 = vshrl.u32 %v121, 7
    %v123 = vsub.s32 4, %v122
    %v124 = vrot.slane %v101, %v123
    %v125 = vlaneseq
    %v126 = vshrl.u32 %v125, 7
    %v127 = vsub.s32 5, %v126
    %v128 = vrot.slane %v101, %v127
    %v129 = vlaneseq
    %v130 = vshrl.u32 %v129, 7
    %v131 = vsub.s32 6, %v130
    %v132 = vrot.slane %v101, %v131
    %v133 = vlaneseq
    %v134 = vshrl.u32 %v133, 7
    %v135 = vsub.s32 7, %v134
    %v136 = vrot.slane %v101, %v135
    %v137 = vlaneseq
    %v138 = vshrl.u32 %v137, 7
    %v139 = vsub.s32 0, %v138
    %v140 = vrot.slane %v102, %v139
    %v141 = vlaneseq
    %v142 = vshrl.u32 %v141, 7
    %v143 = vsub.s32 1, %v142
    %v144 = vrot.slane %v102, %v143
    %v145 = vlaneseq
    %v146 = vshrl.u32 %v145, 7
    %v147 = vsub.s32 2, %v146
    %v148 = vrot.slane %v102, %v147
    %v149 = vlaneseq
    %v150 = vshrl.u32 %v149, 7
    %v151 = vsub.s32 3, %v150
    %v152 = vrot.slane %v102, %v151
    %v153 = vlaneseq
    %v154 = vshrl.u32 %v153, 7
    %v155 = vsub.s32 4, %v154
    %v156 = vrot.slane %v102, %v155
    %v157 = vlaneseq
    %v158 = vshrl.u32 %v157, 7
    %v159 = vsub.s32 5, %v158
    %v160 = vrot.slane %v102, %v159
    %v161 = vlaneseq
    %v162 = vshrl.u32 %v161, 7
    %v163 = vsub.s32 6, %v162
    %v164 = vrot.slane %v102, %v163
    %v165 = vlaneseq
    %v166 = vshrl.u32 %v165, 7
    %v167 = vsub.s32 7, %v166
    %v168 = vrot.slane %v102, %v167
    %vm185 = vcmask 130048
    %v187 = vsel %vm185, %v61, 0
    %v190 = vsel %vm185, %v62, 0
    %v193 = vsel %vm185, %v63, 0
    %v196 = vsel %vm185, %v64, 0
    %v199 = vsel %vm185, %v65, 0
    %v202 = vsel %vm185, %v66, 0
    %v205 = vsel %vm185, %v67, 0
    %v208 = vsel %vm185, %v68, 0
    %210 = vmatprep.subr.mxu0 %v70
    %211 = vmatpush1.msra.mxu0 %v69
    %212 = vmatprep.subr.mxu0 %v86
    %213 = vmatpush1.msra.mxu0 %v85
    %214 = vmatprep.subr.mxu0 0.0
    %215 = vmatpush1.msra.mxu0 0.0
    %216 = vmatprep.subr.mxu0 0.0
    %217 = vmatpush1.msra.mxu0 0.0
    %218 = vmatprep.subr.mxu0 0.0
    %219 = vmatpush1.msra.mxu0 0.0
    %220 = vmatprep.subr.mxu0 0.0
    %221 = vmatpush1.msra.mxu0 0.0
    %222 = vmatprep.subr.mxu0 0.0
    %223 = vmatpush1.msra.mxu0 0.0
    %224 = vmatprep.subr.mxu0 0.0
    %225 = vmatpush1.msra.mxu0 0.0
    %226 = vmatprep.subr.mxu0 0.0
    %227 = vmatpush1.msra.mxu0 0.0
    %228 = vmatprep.subr.mxu0 0.0
    %229 = vmatpush1.msra.mxu0 0.0
    %230 = vmatprep.subr.mxu0 0.0
    %231 = vmatpush1.msra.mxu0 0.0
    %232 = vmatprep.subr.mxu0 0.0
    %233 = vmatpush1.msra.mxu0 0.0
    %234 = vmatprep.subr.mxu0 0.0
    %235 = vmatpush1.msra.mxu0 0.0
    %236 = vmatprep.subr.mxu0 0.0
    %237 = vmatpush1.msra.mxu0 0.0
    %238 = vmatprep.subr.mxu0 0.0
    %239 = vmatpush1.msra.mxu0 0.0
    %240 = vmatprep.subr.mxu0 0.0
    %241 = vmatpush1.msra.mxu0 0.0
    %242 = vmatprep.subr.mxu0 0.0
    %243 = vmatpush1.msra.mxu0 0.0
    %244 = vmatprep.subr.mxu0 0.0
    %245 = vmatpush1.msra.mxu0 0.0
    %246 = vmatprep.subr.mxu0 0.0
    %247 = vmatpush1.msra.mxu0 0.0
    %248 = vmatprep.subr.mxu0 0.0
    %249 = vmatpush1.msra.mxu0 0.0
    %250 = vmatprep.subr.mxu0 0.0
    %251 = vmatpush1.msra.mxu0 0.0
    %252 = vmatprep.subr.mxu0 0.0
    %253 = vmatpush1.msra.mxu0 0.0
    %254 = vmatprep.subr.mxu0 0.0
    %255 = vmatpush1.msra.mxu0 0.0
    %256 = vmatprep.subr.mxu0 0.0
    %257 = vmatpush1.msra.mxu0 0.0
    %258 = vmatprep.subr.mxu0 0.0
    %259 = vmatpush1.msra.mxu0 0.0
    %260 = vmatprep.subr.mxu0 0.0
    %261 = vmatpush1.msra.mxu0 0.0
    %262 = vmatprep.subr.mxu0 0.0
    %263 = vmatpush1.msra.mxu0 0.0
    %264 = vmatprep.subr.mxu0 0.0
    %265 = vmatpush1.msra.mxu0 0.0
    %266 = vmatprep.subr.mxu0 0.0
    %267 = vmatpush1.msra.mxu0 0.0
    %268 = vmatprep.subr.mxu0 0.0
    %269 = vmatpush1.msra.mxu0 0.0
    %270 = vmatprep.subr.mxu0 0.0
    %271 = vmatpush1.msra.mxu0 0.0
    %272 = vmatprep.subr.mxu0 0.0
    %273 = vmatpush1.msra.mxu0 0.0
    %274 = vmatprep.mubr.f32.mxu0 0.0
    %275 = vmatmul.mubr.f32.gmra.mrb[0].mxu0 %v187
    %v276 = vpop.f32.mrb[0].mxu0
    %v277 = vadd.f32 %v108, %v276
    %v278 = vpop.f32.mrb[0].mxu0
    %v279 = vadd.f32 %v112, %v278
    %280 = vmatprep.mubr.f32.mxu0 0.0
    %281 = vmatmul.mubr.f32.gmra.mrb[0].mxu0 %v190
    %v282 = vpop.f32.mrb[0].mxu0
    %v283 = vadd.f32 %v108, %v282
    %v284 = vpop.f32.mrb[0].mxu0
    %v285 = vadd.f32 %v112, %v284
    %286 = vmatprep.mubr.f32.mxu0 0.0
    %287 = vmatmul.mubr.f32.gmra.mrb[0].mxu0 %v193
    %v288 = vpop.f32.mrb[0].mxu0
    %v289 = vadd.f32 %v108, %v288
    %v290 = vpop.f32.mrb[0].mxu0
    %v291 = vadd.f32 %v112, %v290
    %292 = vmatprep.mubr.f32.mxu0 0.0
    %293 = vmatmul.mubr.f32.gmra.mrb[0].mxu0 %v196
    %v294 = vpop.f32.mrb[0].mxu0
    %v295 = vadd.f32 %v108, %v294
    %v296 = vpop.f32.mrb[0].mxu0
    %v297 = vadd.f32 %v112, %v296
    %298 = vmatprep.mubr.f32.mxu0 0.0
    %299 = vmatmul.mubr.f32.gmra.mrb[0].mxu0 %v199
    %v300 = vpop.f32.mrb[0].mxu0
    %v301 = vadd.f32 %v108, %v300
    %v302 = vpop.f32.mrb[0].mxu0
    %v303 = vadd.f32 %v112, %v302
    %304 = vmatprep.mubr.f32.mxu0 0.0
    %305 = vmatmul.mubr.f32.gmra.mrb[0].mxu0 %v202
    %v306 = vpop.f32.mrb[0].mxu0
    %v307 = vadd.f32 %v108, %v306
    %v308 = vpop.f32.mrb[0].mxu0
    %v309 = vadd.f32 %v112, %v308
    %310 = vmatprep.mubr.f32.mxu0 0.0
    %311 = vmatmul.mubr.f32.gmra.mrb[0].mxu0 %v205
    %v312 = vpop.f32.mrb[0].mxu0
    %v313 = vadd.f32 %v108, %v312
    %v314 = vpop.f32.mrb[0].mxu0
    %v315 = vadd.f32 %v112, %v314
    %316 = vmatprep.mubr.f32.mxu0 0.0
    %317 = vmatmul.mubr.f32.gmra.mrb[0].mxu0 %v208
    %v318 = vpop.f32.mrb[0].mxu0
    %v319 = vadd.f32 %v108, %v318
    %v320 = vpop.f32.mrb[0].mxu0
    %v321 = vadd.f32 %v112, %v320
    %322 = vdwg.mxu0
    %323 = vmatprep.subr.mxu0 %v72
    %324 = vmatpush1.msra.mxu0 %v71
    %325 = vmatprep.subr.mxu0 %v88
    %326 = vmatpush1.msra.mxu0 %v87
    %327 = vmatprep.subr.mxu0 0.0
    %328 = vmatpush1.msra.mxu0 0.0
    %329 = vmatprep.subr.mxu0 0.0
    %330 = vmatpush1.msra.mxu0 0.0
    %331 = vmatprep.subr.mxu0 0.0
    %332 = vmatpush1.msra.mxu0 0.0
    %333 = vmatprep.subr.mxu0 0.0
    %334 = vmatpush1.msra.mxu0 0.0
    %335 = vmatprep.subr.mxu0 0.0
    %336 = vmatpush1.msra.mxu0 0.0
    %337 = vmatprep.subr.mxu0 0.0
    %338 = vmatpush1.msra.mxu0 0.0
    %339 = vmatprep.subr.mxu0 0.0
    %340 = vmatpush1.msra.mxu0 0.0
    %341 = vmatprep.subr.mxu0 0.0
    %342 = vmatpush1.msra.mxu0 0.0
    %343 = vmatprep.subr.mxu0 0.0
    %344 = vmatpush1.msra.mxu0 0.0
    %345 = vmatprep.subr.mxu0 0.0
    %346 = vmatpush1.msra.mxu0 0.0
    %347 = vmatprep.subr.mxu0 0.0
    %348 = vmatpush1.msra.mxu0 0.0
    %349 = vmatprep.subr.mxu0 0.0
    %350 = vmatpush1.msra.mxu0 0.0
    %351 = vmatprep.subr.mxu0 0.0
    %352 = vmatpush1.msra.mxu0 0.0
    %353 = vmatprep.subr.mxu0 0.0
    %354 = vmatpush1.msra.mxu0 0.0
    %355 = vmatprep.subr.mxu0 0.0
    %356 = vmatpush1.msra.mxu0 0.0
    %357 = vmatprep.subr.mxu0 0.0
    %358 = vmatpush1.msra.mxu0 0.0
    %359 = vmatprep.subr.mxu0 0.0
    %360 = vmatpush1.msra.mxu0 0.0
    %361 = vmatprep.subr.mxu0 0.0
    %362 = vmatpush1.msra.mxu0 0.0
    %363 = vmatprep.subr.mxu0 0.0
    %364 = vmatpush1.msra.mxu0 0.0
    %365 = vmatprep.subr.mxu0 0.0
    %366 = vmatpush1.msra.mxu0 0.0
    %367 = vmatprep.subr.mxu0 0.0
    %368 = vmatpush1.msra.mxu0 0.0
    %369 = vmatprep.subr.mxu0 0.0
    %370 = vmatpush1.msra.mxu0 0.0
    %371 = vmatprep.subr.mxu0 0.0
    %372 = vmatpush1.msra.mxu0 0.0
    %373 = vmatprep.subr.mxu0 0.0
    %374 = vmatpush1.msra.mxu0 0.0
    %375 = vmatprep.subr.mxu0 0.0
    %376 = vmatpush1.msra.mxu0 0.0
    %377 = vmatprep.subr.mxu0 0.0
    %378 = vmatpush1.msra.mxu0 0.0
    %379 = vmatprep.subr.mxu0 0.0
    %380 = vmatpush1.msra.mxu0 0.0
    %381 = vmatprep.subr.mxu0 0.0
    %382 = vmatpush1.msra.mxu0 0.0
    %383 = vmatprep.subr.mxu0 0.0
    %384 = vmatpush1.msra.mxu0 0.0
    %385 = vmatprep.subr.mxu0 0.0
    %386 = vmatpush1.msra.mxu0 0.0
    %387 = vmatprep.mubr.f32.mxu0 0.0
    %388 = vmatmul.mubr.f32.gmra.mrb[0].mxu0 %v187
    %v389 = vpop.f32.mrb[0].mxu0
    %v390 = vadd.f32 %v116, %v389
    %v391 = vpop.f32.mrb[0].mxu0
    %v392 = vadd.f32 %v120, %v391
    %393 = vmatprep.mubr.f32.mxu0 0.0
    %394 = vmatmul.mubr.f32.gmra.mrb[0].mxu0 %v190
    %v395 = vpop.f32.mrb[0].mxu0
    %v396 = vadd.f32 %v116, %v395
    %v397 = vpop.f32.mrb[0].mxu0
    %v398 = vadd.f32 %v120, %v397
    %399 = vmatprep.mubr.f32.mxu0 0.0
    %400 = vmatmul.mubr.f32.gmra.mrb[0].mxu0 %v193
    %v401 = vpop.f32.mrb[0].mxu0
    %v402 = vadd.f32 %v116, %v401
    %v403 = vpop.f32.mrb[0].mxu0
    %v404 = vadd.f32 %v120, %v403
    %405 = vmatprep.mubr.f32.mxu0 0.0
    %406 = vmatmul.mubr.f32.gmra.mrb[0].mxu0 %v196
    %v407 = vpop.f32.mrb[0].mxu0
    %v408 = vadd.f32 %v116, %v407
    %v409 = vpop.f32.mrb[0].mxu0
    %v410 = vadd.f32 %v120, %v409
    %411 = vmatprep.mubr.f32.mxu0 0.0
    %412 = vmatmul.mubr.f32.gmra.mrb[0].mxu0 %v199
    %v413 = vpop.f32.mrb[0].mxu0
    %v414 = vadd.f32 %v116, %v413
    %v415 = vpop.f32.mrb[0].mxu0
    %v416 = vadd.f32 %v120, %v415
    %417 = vmatprep.mubr.f32.mxu0 0.0
    %418 = vmatmul.mubr.f32.gmra.mrb[0].mxu0 %v202
    %v419 = vpop.f32.mrb[0].mxu0
    %v420 = vadd.f32 %v116, %v419
    %v421 = vpop.f32.mrb[0].mxu0
    %v422 = vadd.f32 %v120, %v421
    %423 = vmatprep.mubr.f32.mxu0 0.0
    %424 = vmatmul.mubr.f32.gmra.mrb[0].mxu0 %v205
    %v425 = vpop.f32.mrb[0].mxu0
    %v426 = vadd.f32 %v116, %v425
    %v427 = vpop.f32.mrb[0].mxu0
    %v428 = vadd.f32 %v120, %v427
    %429 = vmatprep.mubr.f32.mxu0 0.0
    %430 = vmatmul.mubr.f32.gmra.mrb[0].mxu0 %v208
    %v431 = vpop.f32.mrb[0].mxu0
    %v432 = vadd.f32 %v116, %v431
    %v433 = vpop.f32.mrb[0].mxu0
    %v434 = vadd.f32 %v120, %v433
    %435 = vdwg.mxu0
    %436 = vmatprep.subr.mxu0 %v74
    %437 = vmatpush1.msra.mxu0 %v73
    %438 = vmatprep.subr.mxu0 %v90
    %439 = vmatpush1.msra.mxu0 %v89
    %440 = vmatprep.subr.mxu0 0.0
    %441 = vmatpush1.msra.mxu0 0.0
    %442 = vmatprep.subr.mxu0 0.0
    %443 = vmatpush1.msra.mxu0 0.0
    %444 = vmatprep.subr.mxu0 0.0
    %445 = vmatpush1.msra.mxu0 0.0
    %446 = vmatprep.subr.mxu0 0.0
    %447 = vmatpush1.msra.mxu0 0.0
    %448 = vmatprep.subr.mxu0 0.0
    %449 = vmatpush1.msra.mxu0 0.0
    %450 = vmatprep.subr.mxu0 0.0
    %451 = vmatpush1.msra.mxu0 0.0
    %452 = vmatprep.subr.mxu0 0.0
    %453 = vmatpush1.msra.mxu0 0.0
    %454 = vmatprep.subr.mxu0 0.0
    %455 = vmatpush1.msra.mxu0 0.0
    %456 = vmatprep.subr.mxu0 0.0
    %457 = vmatpush1.msra.mxu0 0.0
    %458 = vmatprep.subr.mxu0 0.0
    %459 = vmatpush1.msra.mxu0 0.0
    %460 = vmatprep.subr.mxu0 0.0
    %461 = vmatpush1.msra.mxu0 0.0
    %462 = vmatprep.subr.mxu0 0.0
    %463 = vmatpush1.msra.mxu0 0.0
    %464 = vmatprep.subr.mxu0 0.0
    %465 = vmatpush1.msra.mxu0 0.0
    %466 = vmatprep.subr.mxu0 0.0
    %467 = vmatpush1.msra.mxu0 0.0
    %468 = vmatprep.subr.mxu0 0.0
    %469 = vmatpush1.msra.mxu0 0.0
    %470 = vmatprep.subr.mxu0 0.0
    %471 = vmatpush1.msra.mxu0 0.0
    %472 = vmatprep.subr.mxu0 0.0
    %473 = vmatpush1.msra.mxu0 0.0
    %474 = vmatprep.subr.mxu0 0.0
    %475 = vmatpush1.msra.mxu0 0.0
    %476 = vmatprep.subr.mxu0 0.0
    %477 = vmatpush1.msra.mxu0 0.0
    %478 = vmatprep.subr.mxu0 0.0
    %479 = vmatpush1.msra.mxu0 0.0
    %480 = vmatprep.subr.mxu0 0.0
    %481 = vmatpush1.msra.mxu0 0.0
    %482 = vmatprep.subr.mxu0 0.0
    %483 = vmatpush1.msra.mxu0 0.0
    %484 = vmatprep.subr.mxu0 0.0
    %485 = vmatpush1.msra.mxu0 0.0
    %486 = vmatprep.subr.mxu0 0.0
    %487 = vmatpush1.msra.mxu0 0.0
    %488 = vmatprep.subr.mxu0 0.0
    %489 = vmatpush1.msra.mxu0 0.0
    %490 = vmatprep.subr.mxu0 0.0
    %491 = vmatpush1.msra.mxu0 0.0
    %492 = vmatprep.subr.mxu0 0.0
    %493 = vmatpush1.msra.mxu0 0.0
    %494 = vmatprep.subr.mxu0 0.0
    %495 = vmatpush1.msra.mxu0 0.0
    %496 = vmatprep.subr.mxu0 0.0
    %497 = vmatpush1.msra.mxu0 0.0
    %498 = vmatprep.subr.mxu0 0.0
    %499 = vmatpush1.msra.mxu0 0.0
    %500 = vmatprep.mubr.f32.mxu0 0.0
    %501 = vmatmul.mubr.f32.gmra.mrb[0].mxu0 %v187
    %v502 = vpop.f32.mrb[0].mxu0
    %v503 = vadd.f32 %v124, %v502
    %v504 = vpop.f32.mrb[0].mxu0
    %v505 = vadd.f32 %v128, %v504
    %506 = vmatprep.mubr.f32.mxu0 0.0
    %507 = vmatmul.mubr.f32.gmra.mrb[0].mxu0 %v190
    %v508 = vpop.f32.mrb[0].mxu0
    %v509 = vadd.f32 %v124, %v508
    %v510 = vpop.f32.mrb[0].mxu0
    %v511 = vadd.f32 %v128, %v510
    %512 = vmatprep.mubr.f32.mxu0 0.0
    %513 = vmatmul.mubr.f32.gmra.mrb[0].mxu0 %v193
    %v514 = vpop.f32.mrb[0].mxu0
    %v515 = vadd.f32 %v124, %v514
    %v516 = vpop.f32.mrb[0].mxu0
    %v517 = vadd.f32 %v128, %v516
    %518 = vmatprep.mubr.f32.mxu0 0.0
    %519 = vmatmul.mubr.f32.gmra.mrb[0].mxu0 %v196
    %v520 = vpop.f32.mrb[0].mxu0
    %v521 = vadd.f32 %v124, %v520
    %v522 = vpop.f32.mrb[0].mxu0
    %v523 = vadd.f32 %v128, %v522
    %524 = vmatprep.mubr.f32.mxu0 0.0
    %525 = vmatmul.mubr.f32.gmra.mrb[0].mxu0 %v199
    %v526 = vpop.f32.mrb[0].mxu0
    %v527 = vadd.f32 %v124, %v526
    %v528 = vpop.f32.mrb[0].mxu0
    %v529 = vadd.f32 %v128, %v528
    %530 = vmatprep.mubr.f32.mxu0 0.0
    %531 = vmatmul.mubr.f32.gmra.mrb[0].mxu0 %v202
    %v532 = vpop.f32.mrb[0].mxu0
    %v533 = vadd.f32 %v124, %v532
    %v534 = vpop.f32.mrb[0].mxu0
    %v535 = vadd.f32 %v128, %v534
    %536 = vmatprep.mubr.f32.mxu0 0.0
    %537 = vmatmul.mubr.f32.gmra.mrb[0].mxu0 %v205
    %v538 = vpop.f32.mrb[0].mxu0
    %v539 = vadd.f32 %v124, %v538
    %v540 = vpop.f32.mrb[0].mxu0
    %v541 = vadd.f32 %v128, %v540
    %542 = vmatprep.mubr.f32.mxu0 0.0
    %543 = vmatmul.mubr.f32.gmra.mrb[0].mxu0 %v208
    %v544 = vpop.f32.mrb[0].mxu0
    %v545 = vadd.f32 %v124, %v544
    %v546 = vpop.f32.mrb[0].mxu0
    %v547 = vadd.f32 %v128, %v546
    %548 = vdwg.mxu0
    %549 = vmatprep.subr.mxu0 %v76
    %550 = vmatpush1.msra.mxu0 %v75
    %551 = vmatprep.subr.mxu0 %v92
    %552 = vmatpush1.msra.mxu0 %v91
    %553 = vmatprep.subr.mxu0 0.0
    %554 = vmatpush1.msra.mxu0 0.0
    %555 = vmatprep.subr.mxu0 0.0
    %556 = vmatpush1.msra.mxu0 0.0
    %557 = vmatprep.subr.mxu0 0.0
    %558 = vmatpush1.msra.mxu0 0.0
    %559 = vmatprep.subr.mxu0 0.0
    %560 = vmatpush1.msra.mxu0 0.0
    %561 = vmatprep.subr.mxu0 0.0
    %562 = vmatpush1.msra.mxu0 0.0
    %563 = vmatprep.subr.mxu0 0.0
    %564 = vmatpush1.msra.mxu0 0.0
    %565 = vmatprep.subr.mxu0 0.0
    %566 = vmatpush1.msra.mxu0 0.0
    %567 = vmatprep.subr.mxu0 0.0
    %568 = vmatpush1.msra.mxu0 0.0
    %569 = vmatprep.subr.mxu0 0.0
    %570 = vmatpush1.msra.mxu0 0.0
    %571 = vmatprep.subr.mxu0 0.0
    %572 = vmatpush1.msra.mxu0 0.0
    %573 = vmatprep.subr.mxu0 0.0
    %574 = vmatpush1.msra.mxu0 0.0
    %575 = vmatprep.subr.mxu0 0.0
    %576 = vmatpush1.msra.mxu0 0.0
    %577 = vmatprep.subr.mxu0 0.0
    %578 = vmatpush1.msra.mxu0 0.0
    %579 = vmatprep.subr.mxu0 0.0
    %580 = vmatpush1.msra.mxu0 0.0
    %581 = vmatprep.subr.mxu0 0.0
    %582 = vmatpush1.msra.mxu0 0.0
    %583 = vmatprep.subr.mxu0 0.0
    %584 = vmatpush1.msra.mxu0 0.0
    %585 = vmatprep.subr.mxu0 0.0
    %586 = vmatpush1.msra.mxu0 0.0
    %587 = vmatprep.subr.mxu0 0.0
    %588 = vmatpush1.msra.mxu0 0.0
    %589 = vmatprep.subr.mxu0 0.0
    %590 = vmatpush1.msra.mxu0 0.0
    %591 = vmatprep.subr.mxu0 0.0
    %592 = vmatpush1.msra.mxu0 0.0
    %593 = vmatprep.subr.mxu0 0.0
    %594 = vmatpush1.msra.mxu0 0.0
    %595 = vmatprep.subr.mxu0 0.0
    %596 = vmatpush1.msra.mxu0 0.0
    %597 = vmatprep.subr.mxu0 0.0
    %598 = vmatpush1.msra.mxu0 0.0
    %599 = vmatprep.subr.mxu0 0.0
    %600 = vmatpush1.msra.mxu0 0.0
    %601 = vmatprep.subr.mxu0 0.0
    %602 = vmatpush1.msra.mxu0 0.0
    %603 = vmatprep.subr.mxu0 0.0
    %604 = vmatpush1.msra.mxu0 0.0
    %605 = vmatprep.subr.mxu0 0.0
    %606 = vmatpush1.msra.mxu0 0.0
    %607 = vmatprep.subr.mxu0 0.0
    %608 = vmatpush1.msra.mxu0 0.0
    %609 = vmatprep.subr.mxu0 0.0
    %610 = vmatpush1.msra.mxu0 0.0
    %611 = vmatprep.subr.mxu0 0.0
    %612 = vmatpush1.msra.mxu0 0.0
    %613 = vmatprep.mubr.f32.mxu0 0.0
    %614 = vmatmul.mubr.f32.gmra.mrb[0].mxu0 %v187
    %v615 = vpop.f32.mrb[0].mxu0
    %v616 = vadd.f32 %v132, %v615
    %v617 = vpop.f32.mrb[0].mxu0
    %v618 = vadd.f32 %v136, %v617
    %619 = vmatprep.mubr.f32.mxu0 0.0
    %620 = vmatmul.mubr.f32.gmra.mrb[0].mxu0 %v190
    %v621 = vpop.f32.mrb[0].mxu0
    %v622 = vadd.f32 %v132, %v621
    %v623 = vpop.f32.mrb[0].mxu0
    %v624 = vadd.f32 %v136, %v623
    %625 = vmatprep.mubr.f32.mxu0 0.0
    %626 = vmatmul.mubr.f32.gmra.mrb[0].mxu0 %v193
    %v627 = vpop.f32.mrb[0].mxu0
    %v628 = vadd.f32 %v132, %v627
    %v629 = vpop.f32.mrb[0].mxu0
    %v630 = vadd.f32 %v136, %v629
    %631 = vmatprep.mubr.f32.mxu0 0.0
    %632 = vmatmul.mubr.f32.gmra.mrb[0].mxu0 %v196
    %v633 = vpop.f32.mrb[0].mxu0
    %v634 = vadd.f32 %v132, %v633
    %v635 = vpop.f32.mrb[0].mxu0
    %v636 = vadd.f32 %v136, %v635
    %637 = vmatprep.mubr.f32.mxu0 0.0
    %638 = vmatmul.mubr.f32.gmra.mrb[0].mxu0 %v199
    %v639 = vpop.f32.mrb[0].mxu0
    %v640 = vadd.f32 %v132, %v639
    %v641 = vpop.f32.mrb[0].mxu0
    %v642 = vadd.f32 %v136, %v641
    %643 = vmatprep.mubr.f32.mxu0 0.0
    %644 = vmatmul.mubr.f32.gmra.mrb[0].mxu0 %v202
    %v645 = vpop.f32.mrb[0].mxu0
    %v646 = vadd.f32 %v132, %v645
    %v647 = vpop.f32.mrb[0].mxu0
    %v648 = vadd.f32 %v136, %v647
    %649 = vmatprep.mubr.f32.mxu0 0.0
    %650 = vmatmul.mubr.f32.gmra.mrb[0].mxu0 %v205
    %v651 = vpop.f32.mrb[0].mxu0
    %v652 = vadd.f32 %v132, %v651
    %v653 = vpop.f32.mrb[0].mxu0
    %v654 = vadd.f32 %v136, %v653
    %655 = vmatprep.mubr.f32.mxu0 0.0
    %656 = vmatmul.mubr.f32.gmra.mrb[0].mxu0 %v208
    %v657 = vpop.f32.mrb[0].mxu0
    %v658 = vadd.f32 %v132, %v657
    %v659 = vpop.f32.mrb[0].mxu0
    %v660 = vadd.f32 %v136, %v659
    %661 = vdwg.mxu0
    %662 = vmatprep.subr.mxu0 %v78
    %663 = vmatpush1.msra.mxu0 %v77
    %664 = vmatprep.subr.mxu0 %v94
    %665 = vmatpush1.msra.mxu0 %v93
    %666 = vmatprep.subr.mxu0 0.0
    %667 = vmatpush1.msra.mxu0 0.0
    %668 = vmatprep.subr.mxu0 0.0
    %669 = vmatpush1.msra.mxu0 0.0
    %670 = vmatprep.subr.mxu0 0.0
    %671 = vmatpush1.msra.mxu0 0.0
    %672 = vmatprep.subr.mxu0 0.0
    %673 = vmatpush1.msra.mxu0 0.0
    %674 = vmatprep.subr.mxu0 0.0
    %675 = vmatpush1.msra.mxu0 0.0
    %676 = vmatprep.subr.mxu0 0.0
    %677 = vmatpush1.msra.mxu0 0.0
    %678 = vmatprep.subr.mxu0 0.0
    %679 = vmatpush1.msra.mxu0 0.0
    %680 = vmatprep.subr.mxu0 0.0
    %681 = vmatpush1.msra.mxu0 0.0
    %682 = vmatprep.subr.mxu0 0.0
    %683 = vmatpush1.msra.mxu0 0.0
    %684 = vmatprep.subr.mxu0 0.0
    %685 = vmatpush1.msra.mxu0 0.0
    %686 = vmatprep.subr.mxu0 0.0
    %687 = vmatpush1.msra.mxu0 0.0
    %688 = vmatprep.subr.mxu0 0.0
    %689 = vmatpush1.msra.mxu0 0.0
    %690 = vmatprep.subr.mxu0 0.0
    %691 = vmatpush1.msra.mxu0 0.0
    %692 = vmatprep.subr.mxu0 0.0
    %693 = vmatpush1.msra.mxu0 0.0
    %694 = vmatprep.subr.mxu0 0.0
    %695 = vmatpush1.msra.mxu0 0.0
    %696 = vmatprep.subr.mxu0 0.0
    %697 = vmatpush1.msra.mxu0 0.0
    %698 = vmatprep.subr.mxu0 0.0
    %699 = vmatpush1.msra.mxu0 0.0
    %700 = vmatprep.subr.mxu0 0.0
    %701 = vmatpush1.msra.mxu0 0.0
    %702 = vmatprep.subr.mxu0 0.0
    %703 = vmatpush1.msra.mxu0 0.0
    %704 = vmatprep.subr.mxu0 0.0
    %705 = vmatpush1.msra.mxu0 0.0
    %706 = vmatprep.subr.mxu0 0.0
    %707 = vmatpush1.msra.mxu0 0.0
    %708 = vmatprep.subr.mxu0 0.0
    %709 = vmatpush1.msra.mxu0 0.0
    %710 = vmatprep.subr.mxu0 0.0
    %711 = vmatpush1.msra.mxu0 0.0
    %712 = vmatprep.subr.mxu0 0.0
    %713 = vmatpush1.msra.mxu0 0.0
    %714 = vmatprep.subr.mxu0 0.0
    %715 = vmatpush1.msra.mxu0 0.0
    %716 = vmatprep.subr.mxu0 0.0
    %717 = vmatpush1.msra.mxu0 0.0
    %718 = vmatprep.subr.mxu0 0.0
    %719 = vmatpush1.msra.mxu0 0.0
    %720 = vmatprep.subr.mxu0 0.0
    %721 = vmatpush1.msra.mxu0 0.0
    %722 = vmatprep.subr.mxu0 0.0
    %723 = vmatpush1.msra.mxu0 0.0
    %724 = vmatprep.subr.mxu0 0.0
    %725 = vmatpush1.msra.mxu0 0.0
    %726 = vmatprep.mubr.f32.mxu0 0.0
    %727 = vmatmul.mubr.f32.gmra.mrb[0].mxu0 %v187
    %v728 = vpop.f32.mrb[0].mxu0
    %v729 = vadd.f32 %v140, %v728
    %v730 = vpop.f32.mrb[0].mxu0
    %v731 = vadd.f32 %v144, %v730
    %732 = vmatprep.mubr.f32.mxu0 0.0
    %733 = vmatmul.mubr.f32.gmra.mrb[0].mxu0 %v190
    %v734 = vpop.f32.mrb[0].mxu0
    %v735 = vadd.f32 %v140, %v734
    %v736 = vpop.f32.mrb[0].mxu0
    %v737 = vadd.f32 %v144, %v736
    %738 = vmatprep.mubr.f32.mxu0 0.0
    %739 = vmatmul.mubr.f32.gmra.mrb[0].mxu0 %v193
    %v740 = vpop.f32.mrb[0].mxu0
    %v741 = vadd.f32 %v140, %v740
    %v742 = vpop.f32.mrb[0].mxu0
    %v743 = vadd.f32 %v144, %v742
    %744 = vmatprep.mubr.f32.mxu0 0.0
    %745 = vmatmul.mubr.f32.gmra.mrb[0].mxu0 %v196
    %v746 = vpop.f32.mrb[0].mxu0
    %v747 = vadd.f32 %v140, %v746
    %v748 = vpop.f32.mrb[0].mxu0
    %v749 = vadd.f32 %v144, %v748
    %750 = vmatprep.mubr.f32.mxu0 0.0
    %751 = vmatmul.mubr.f32.gmra.mrb[0].mxu0 %v199
    %v752 = vpop.f32.mrb[0].mxu0
    %v753 = vadd.f32 %v140, %v752
    %v754 = vpop.f32.mrb[0].mxu0
    %v755 = vadd.f32 %v144, %v754
    %756 = vmatprep.mubr.f32.mxu0 0.0
    %757 = vmatmul.mubr.f32.gmra.mrb[0].mxu0 %v202
    %v758 = vpop.f32.mrb[0].mxu0
    %v759 = vadd.f32 %v140, %v758
    %v760 = vpop.f32.mrb[0].mxu0
    %v761 = vadd.f32 %v144, %v760
    %762 = vmatprep.mubr.f32.mxu0 0.0
    %763 = vmatmul.mubr.f32.gmra.mrb[0].mxu0 %v205
    %v764 = vpop.f32.mrb[0].mxu0
    %v765 = vadd.f32 %v140, %v764
    %v766 = vpop.f32.mrb[0].mxu0
    %v767 = vadd.f32 %v144, %v766
    %768 = vmatprep.mubr.f32.mxu0 0.0
    %769 = vmatmul.mubr.f32.gmra.mrb[0].mxu0 %v208
    %v770 = vpop.f32.mrb[0].mxu0
    %v771 = vadd.f32 %v140, %v770
    %v772 = vpop.f32.mrb[0].mxu0
    %v773 = vadd.f32 %v144, %v772
    %774 = vdwg.mxu0
    %775 = vmatprep.subr.mxu0 %v80
    %776 = vmatpush1.msra.mxu0 %v79
    %777 = vmatprep.subr.mxu0 %v96
    %778 = vmatpush1.msra.mxu0 %v95
    %779 = vmatprep.subr.mxu0 0.0
    %780 = vmatpush1.msra.mxu0 0.0
    %781 = vmatprep.subr.mxu0 0.0
    %782 = vmatpush1.msra.mxu0 0.0
    %783 = vmatprep.subr.mxu0 0.0
    %784 = vmatpush1.msra.mxu0 0.0
    %785 = vmatprep.subr.mxu0 0.0
    %786 = vmatpush1.msra.mxu0 0.0
    %787 = vmatprep.subr.mxu0 0.0
    %788 = vmatpush1.msra.mxu0 0.0
    %789 = vmatprep.subr.mxu0 0.0
    %790 = vmatpush1.msra.mxu0 0.0
    %791 = vmatprep.subr.mxu0 0.0
    %792 = vmatpush1.msra.mxu0 0.0
    %793 = vmatprep.subr.mxu0 0.0
    %794 = vmatpush1.msra.mxu0 0.0
    %795 = vmatprep.subr.mxu0 0.0
    %796 = vmatpush1.msra.mxu0 0.0
    %797 = vmatprep.subr.mxu0 0.0
    %798 = vmatpush1.msra.mxu0 0.0
    %799 = vmatprep.subr.mxu0 0.0
    %800 = vmatpush1.msra.mxu0 0.0
    %801 = vmatprep.subr.mxu0 0.0
    %802 = vmatpush1.msra.mxu0 0.0
    %803 = vmatprep.subr.mxu0 0.0
    %804 = vmatpush1.msra.mxu0 0.0
    %805 = vmatprep.subr.mxu0 0.0
    %806 = vmatpush1.msra.mxu0 0.0
    %807 = vmatprep.subr.mxu0 0.0
    %808 = vmatpush1.msra.mxu0 0.0
    %809 = vmatprep.subr.mxu0 0.0
    %810 = vmatpush1.msra.mxu0 0.0
    %811 = vmatprep.subr.mxu0 0.0
    %812 = vmatpush1.msra.mxu0 0.0
    %813 = vmatprep.subr.mxu0 0.0
    %814 = vmatpush1.msra.mxu0 0.0
    %815 = vmatprep.subr.mxu0 0.0
    %816 = vmatpush1.msra.mxu0 0.0
    %817 = vmatprep.subr.mxu0 0.0
    %818 = vmatpush1.msra.mxu0 0.0
    %819 = vmatprep.subr.mxu0 0.0
    %820 = vmatpush1.msra.mxu0 0.0
    %821 = vmatprep.subr.mxu0 0.0
    %822 = vmatpush1.msra.mxu0 0.0
    %823 = vmatprep.subr.mxu0 0.0
    %824 = vmatpush1.msra.mxu0 0.0
    %825 = vmatprep.subr.mxu0 0.0
    %826 = vmatpush1.msra.mxu0 0.0
    %827 = vmatprep.subr.mxu0 0.0
    %828 = vmatpush1.msra.mxu0 0.0
    %829 = vmatprep.subr.mxu0 0.0
    %830 = vmatpush1.msra.mxu0 0.0
    %831 = vmatprep.subr.mxu0 0.0
    %832 = vmatpush1.msra.mxu0 0.0
    %833 = vmatprep.subr.mxu0 0.0
    %834 = vmatpush1.msra.mxu0 0.0
    %835 = vmatprep.subr.mxu0 0.0
    %836 = vmatpush1.msra.mxu0 0.0
    %837 = vmatprep.subr.mxu0 0.0
    %838 = vmatpush1.msra.mxu0 0.0
    %839 = vmatprep.mubr.f32.mxu0 0.0
    %840 = vmatmul.mubr.f32.gmra.mrb[0].mxu0 %v187
    %v841 = vpop.f32.mrb[0].mxu0
    %v842 = vadd.f32 %v148, %v841
    %v843 = vpop.f32.mrb[0].mxu0
    %v844 = vadd.f32 %v152, %v843
    %845 = vmatprep.mubr.f32.mxu0 0.0
    %846 = vmatmul.mubr.f32.gmra.mrb[0].mxu0 %v190
    %v847 = vpop.f32.mrb[0].mxu0
    %v848 = vadd.f32 %v148, %v847
    %v849 = vpop.f32.mrb[0].mxu0
    %v850 = vadd.f32 %v152, %v849
    %851 = vmatprep.mubr.f32.mxu0 0.0
    %852 = vmatmul.mubr.f32.gmra.mrb[0].mxu0 %v193
    %v853 = vpop.f32.mrb[0].mxu0
    %v854 = vadd.f32 %v148, %v853
    %v855 = vpop.f32.mrb[0].mxu0
    %v856 = vadd.f32 %v152, %v855
    %857 = vmatprep.mubr.f32.mxu0 0.0
    %858 = vmatmul.mubr.f32.gmra.mrb[0].mxu0 %v196
    %v859 = vpop.f32.mrb[0].mxu0
    %v860 = vadd.f32 %v148, %v859
    %v861 = vpop.f32.mrb[0].mxu0
    %v862 = vadd.f32 %v152, %v861
    %863 = vmatprep.mubr.f32.mxu0 0.0
    %864 = vmatmul.mubr.f32.gmra.mrb[0].mxu0 %v199
    %v865 = vpop.f32.mrb[0].mxu0
    %v866 = vadd.f32 %v148, %v865
    %v867 = vpop.f32.mrb[0].mxu0
    %v868 = vadd.f32 %v152, %v867
    %869 = vmatprep.mubr.f32.mxu0 0.0
    %870 = vmatmul.mubr.f32.gmra.mrb[0].mxu0 %v202
    %v871 = vpop.f32.mrb[0].mxu0
    %v872 = vadd.f32 %v148, %v871
    %v873 = vpop.f32.mrb[0].mxu0
    %v874 = vadd.f32 %v152, %v873
    %875 = vmatprep.mubr.f32.mxu0 0.0
    %876 = vmatmul.mubr.f32.gmra.mrb[0].mxu0 %v205
    %v877 = vpop.f32.mrb[0].mxu0
    %v878 = vadd.f32 %v148, %v877
    %v879 = vpop.f32.mrb[0].mxu0
    %v880 = vadd.f32 %v152, %v879
    %881 = vmatprep.mubr.f32.mxu0 0.0
    %882 = vmatmul.mubr.f32.gmra.mrb[0].mxu0 %v208
    %v883 = vpop.f32.mrb[0].mxu0
    %v884 = vadd.f32 %v148, %v883
    %v885 = vpop.f32.mrb[0].mxu0
    %v886 = vadd.f32 %v152, %v885
    %887 = vdwg.mxu0
    %888 = vmatprep.subr.mxu0 %v82
    %889 = vmatpush1.msra.mxu0 %v81
    %890 = vmatprep.subr.mxu0 %v98
    %891 = vmatpush1.msra.mxu0 %v97
    %892 = vmatprep.subr.mxu0 0.0
    %893 = vmatpush1.msra.mxu0 0.0
    %894 = vmatprep.subr.mxu0 0.0
    %895 = vmatpush1.msra.mxu0 0.0
    %896 = vmatprep.subr.mxu0 0.0
    %897 = vmatpush1.msra.mxu0 0.0
    %898 = vmatprep.subr.mxu0 0.0
    %899 = vmatpush1.msra.mxu0 0.0
    %900 = vmatprep.subr.mxu0 0.0
    %901 = vmatpush1.msra.mxu0 0.0
    %902 = vmatprep.subr.mxu0 0.0
    %903 = vmatpush1.msra.mxu0 0.0
    %904 = vmatprep.subr.mxu0 0.0
    %905 = vmatpush1.msra.mxu0 0.0
    %906 = vmatprep.subr.mxu0 0.0
    %907 = vmatpush1.msra.mxu0 0.0
    %908 = vmatprep.subr.mxu0 0.0
    %909 = vmatpush1.msra.mxu0 0.0
    %910 = vmatprep.subr.mxu0 0.0
    %911 = vmatpush1.msra.mxu0 0.0
    %912 = vmatprep.subr.mxu0 0.0
    %913 = vmatpush1.msra.mxu0 0.0
    %914 = vmatprep.subr.mxu0 0.0
    %915 = vmatpush1.msra.mxu0 0.0
    %916 = vmatprep.subr.mxu0 0.0
    %917 = vmatpush1.msra.mxu0 0.0
    %918 = vmatprep.subr.mxu0 0.0
    %919 = vmatpush1.msra.mxu0 0.0
    %920 = vmatprep.subr.mxu0 0.0
    %921 = vmatpush1.msra.mxu0 0.0
    %922 = vmatprep.subr.mxu0 0.0
    %923 = vmatpush1.msra.mxu0 0.0
    %924 = vmatprep.subr.mxu0 0.0
    %925 = vmatpush1.msra.mxu0 0.0
    %926 = vmatprep.subr.mxu0 0.0
    %927 = vmatpush1.msra.mxu0 0.0
    %928 = vmatprep.subr.mxu0 0.0
    %929 = vmatpush1.msra.mxu0 0.0
    %930 = vmatprep.subr.mxu0 0.0
    %931 = vmatpush1.msra.mxu0 0.0
    %932 = vmatprep.subr.mxu0 0.0
    %933 = vmatpush1.msra.mxu0 0.0
    %934 = vmatprep.subr.mxu0 0.0
    %935 = vmatpush1.msra.mxu0 0.0
    %936 = vmatprep.subr.mxu0 0.0
    %937 = vmatpush1.msra.mxu0 0.0
    %938 = vmatprep.subr.mxu0 0.0
    %939 = vmatpush1.msra.mxu0 0.0
    %940 = vmatprep.subr.mxu0 0.0
    %941 = vmatpush1.msra.mxu0 0.0
    %942 = vmatprep.subr.mxu0 0.0
    %943 = vmatpush1.msra.mxu0 0.0
    %944 = vmatprep.subr.mxu0 0.0
    %945 = vmatpush1.msra.mxu0 0.0
    %946 = vmatprep.subr.mxu0 0.0
    %947 = vmatpush1.msra.mxu0 0.0
    %948 = vmatprep.subr.mxu0 0.0
    %949 = vmatpush1.msra.mxu0 0.0
    %950 = vmatprep.subr.mxu0 0.0
    %951 = vmatpush1.msra.mxu0 0.0
    %952 = vmatprep.mubr.f32.mxu0 0.0
    %953 = vmatmul.mubr.f32.gmra.mrb[0].mxu0 %v187
    %v954 = vpop.f32.mrb[0].mxu0
    %v955 = vadd.f32 %v156, %v954
    %v956 = vpop.f32.mrb[0].mxu0
    %v957 = vadd.f32 %v160, %v956
    %958 = vmatprep.mubr.f32.mxu0 0.0
    %959 = vmatmul.mubr.f32.gmra.mrb[0].mxu0 %v190
    %v960 = vpop.f32.mrb[0].mxu0
    %v961 = vadd.f32 %v156, %v960
    %v962 = vpop.f32.mrb[0].mxu0
    %v963 = vadd.f32 %v160, %v962
    %964 = vmatprep.mubr.f32.mxu0 0.0
    %965 = vmatmul.mubr.f32.gmra.mrb[0].mxu0 %v193
    %v966 = vpop.f32.mrb[0].mxu0
    %v967 = vadd.f32 %v156, %v966
    %v968 = vpop.f32.mrb[0].mxu0
    %v969 = vadd.f32 %v160, %v968
    %970 = vmatprep.mubr.f32.mxu0 0.0
    %971 = vmatmul.mubr.f32.gmra.mrb[0].mxu0 %v196
    %v972 = vpop.f32.mrb[0].mxu0
    %v973 = vadd.f32 %v156, %v972
    %v974 = vpop.f32.mrb[0].mxu0
    %v975 = vadd.f32 %v160, %v974
    %976 = vmatprep.mubr.f32.mxu0 0.0
    %977 = vmatmul.mubr.f32.gmra.mrb[0].mxu0 %v199
    %v978 = vpop.f32.mrb[0].mxu0
    %v979 = vadd.f32 %v156, %v978
    %v980 = vpop.f32.mrb[0].mxu0
    %v981 = vadd.f32 %v160, %v980
    %982 = vmatprep.mubr.f32.mxu0 0.0
    %983 = vmatmul.mubr.f32.gmra.mrb[0].mxu0 %v202
    %v984 = vpop.f32.mrb[0].mxu0
    %v985 = vadd.f32 %v156, %v984
    %v986 = vpop.f32.mrb[0].mxu0
    %v987 = vadd.f32 %v160, %v986
    %988 = vmatprep.mubr.f32.mxu0 0.0
    %989 = vmatmul.mubr.f32.gmra.mrb[0].mxu0 %v205
    %v990 = vpop.f32.mrb[0].mxu0
    %v991 = vadd.f32 %v156, %v990
    %v992 = vpop.f32.mrb[0].mxu0
    %v993 = vadd.f32 %v160, %v992
    %994 = vmatprep.mubr.f32.mxu0 0.0
    %995 = vmatmul.mubr.f32.gmra.mrb[0].mxu0 %v208
    %v996 = vpop.f32.mrb[0].mxu0
    %v997 = vadd.f32 %v156, %v996
    %v998 = vpop.f32.mrb[0].mxu0
    %v999 = vadd.f32 %v160, %v998
    %1000 = vdwg.mxu0
    %1001 = vmatprep.subr.mxu0 %v84
    %1002 = vmatpush1.msra.mxu0 %v83
    %1003 = vmatprep.subr.mxu0 %v100
    %1004 = vmatpush1.msra.mxu0 %v99
    %1005 = vmatprep.subr.mxu0 0.0
    %1006 = vmatpush1.msra.mxu0 0.0
    %1007 = vmatprep.subr.mxu0 0.0
    %1008 = vmatpush1.msra.mxu0 0.0
    %1009 = vmatprep.subr.mxu0 0.0
    %1010 = vmatpush1.msra.mxu0 0.0
    %1011 = vmatprep.subr.mxu0 0.0
    %1012 = vmatpush1.msra.mxu0 0.0
    %1013 = vmatprep.subr.mxu0 0.0
    %1014 = vmatpush1.msra.mxu0 0.0
    %1015 = vmatprep.subr.mxu0 0.0
    %1016 = vmatpush1.msra.mxu0 0.0
    %1017 = vmatprep.subr.mxu0 0.0
    %1018 = vmatpush1.msra.mxu0 0.0
    %1019 = vmatprep.subr.mxu0 0.0
    %1020 = vmatpush1.msra.mxu0 0.0
    %1021 = vmatprep.subr.mxu0 0.0
    %1022 = vmatpush1.msra.mxu0 0.0
    %1023 = vmatprep.subr.mxu0 0.0
    %1024 = vmatpush1.msra.mxu0 0.0
    %1025 = vmatprep.subr.mxu0 0.0
    %1026 = vmatpush1.msra.mxu0 0.0
    %1027 = vmatprep.subr.mxu0 0.0
    %1028 = vmatpush1.msra.mxu0 0.0
    %1029 = vmatprep.subr.mxu0 0.0
    %1030 = vmatpush1.msra.mxu0 0.0
    %1031 = vmatprep.subr.mxu0 0.0
    %1032 = vmatpush1.msra.mxu0 0.0
    %1033 = vmatprep.subr.mxu0 0.0
    %1034 = vmatpush1.msra.mxu0 0.0
    %1035 = vmatprep.subr.mxu0 0.0
    %1036 = vmatpush1.msra.mxu0 0.0
    %1037 = vmatprep.subr.mxu0 0.0
    %1038 = vmatpush1.msra.mxu0 0.0
    %1039 = vmatprep.subr.mxu0 0.0
    %1040 = vmatpush1.msra.mxu0 0.0
    %1041 = vmatprep.subr.mxu0 0.0
    %1042 = vmatpush1.msra.mxu0 0.0
    %1043 = vmatprep.subr.mxu0 0.0
    %1044 = vmatpush1.msra.mxu0 0.0
    %1045 = vmatprep.subr.mxu0 0.0
    %1046 = vmatpush1.msra.mxu0 0.0
    %1047 = vmatprep.subr.mxu0 0.0
    %1048 = vmatpush1.msra.mxu0 0.0
    %1049 = vmatprep.subr.mxu0 0.0
    %1050 = vmatpush1.msra.mxu0 0.0
    %1051 = vmatprep.subr.mxu0 0.0
    %1052 = vmatpush1.msra.mxu0 0.0
    %1053 = vmatprep.subr.mxu0 0.0
    %1054 = vmatpush1.msra.mxu0 0.0
    %1055 = vmatprep.subr.mxu0 0.0
    %1056 = vmatpush1.msra.mxu0 0.0
    %1057 = vmatprep.subr.mxu0 0.0
    %1058 = vmatpush1.msra.mxu0 0.0
    %1059 = vmatprep.subr.mxu0 0.0
    %1060 = vmatpush1.msra.mxu0 0.0
    %1061 = vmatprep.subr.mxu0 0.0
    %1062 = vmatpush1.msra.mxu0 0.0
    %1063 = vmatprep.subr.mxu0 0.0
    %1064 = vmatpush1.msra.mxu0 0.0
    %1065 = vmatprep.mubr.f32.mxu0 0.0
    %1066 = vmatmul.mubr.f32.gmra.mrb[0].mxu0 %v187
    %v1067 = vpop.f32.mrb[0].mxu0
    %v1068 = vadd.f32 %v164, %v1067
    %v1069 = vpop.f32.mrb[0].mxu0
    %v1070 = vadd.f32 %v168, %v1069
    %1071 = vmatprep.mubr.f32.mxu0 0.0
    %1072 = vmatmul.mubr.f32.gmra.mrb[0].mxu0 %v190
    %v1073 = vpop.f32.mrb[0].mxu0
    %v1074 = vadd.f32 %v164, %v1073
    %v1075 = vpop.f32.mrb[0].mxu0
    %v1076 = vadd.f32 %v168, %v1075
    %1077 = vmatprep.mubr.f32.mxu0 0.0
    %1078 = vmatmul.mubr.f32.gmra.mrb[0].mxu0 %v193
    %v1079 = vpop.f32.mrb[0].mxu0
    %v1080 = vadd.f32 %v164, %v1079
    %v1081 = vpop.f32.mrb[0].mxu0
    %v1082 = vadd.f32 %v168, %v1081
    %1083 = vmatprep.mubr.f32.mxu0 0.0
    %1084 = vmatmul.mubr.f32.gmra.mrb[0].mxu0 %v196
    %v1085 = vpop.f32.mrb[0].mxu0
    %v1086 = vadd.f32 %v164, %v1085
    %v1087 = vpop.f32.mrb[0].mxu0
    %v1088 = vadd.f32 %v168, %v1087
    %1089 = vmatprep.mubr.f32.mxu0 0.0
    %1090 = vmatmul.mubr.f32.gmra.mrb[0].mxu0 %v199
    %v1091 = vpop.f32.mrb[0].mxu0
    %v1092 = vadd.f32 %v164, %v1091
    %v1093 = vpop.f32.mrb[0].mxu0
    %v1094 = vadd.f32 %v168, %v1093
    %1095 = vmatprep.mubr.f32.mxu0 0.0
    %1096 = vmatmul.mubr.f32.gmra.mrb[0].mxu0 %v202
    %v1097 = vpop.f32.mrb[0].mxu0
    %v1098 = vadd.f32 %v164, %v1097
    %v1099 = vpop.f32.mrb[0].mxu0
    %v1100 = vadd.f32 %v168, %v1099
    %1101 = vmatprep.mubr.f32.mxu0 0.0
    %1102 = vmatmul.mubr.f32.gmra.mrb[0].mxu0 %v205
    %v1103 = vpop.f32.mrb[0].mxu0
    %v1104 = vadd.f32 %v164, %v1103
    %v1105 = vpop.f32.mrb[0].mxu0
    %v1106 = vadd.f32 %v168, %v1105
    %1107 = vmatprep.mubr.f32.mxu0 0.0
    %1108 = vmatmul.mubr.f32.gmra.mrb[0].mxu0 %v208
    %v1109 = vpop.f32.mrb[0].mxu0
    %v1110 = vadd.f32 %v164, %v1109
    %v1111 = vpop.f32.mrb[0].mxu0
    %v1112 = vadd.f32 %v168, %v1111
    %1113 = vdwg.mxu0
    %vm1114 = vcmp.ge.f32.partialorder %v277, 0.0
    %vm1115 = vcmp.ge.f32.partialorder %v279, 0.0
    %vm1116 = vcmp.ge.f32.partialorder %v390, 0.0
    %vm1117 = vcmp.ge.f32.partialorder %v392, 0.0
    %vm1118 = vcmp.ge.f32.partialorder %v503, 0.0
    %vm1119 = vcmp.ge.f32.partialorder %v505, 0.0
    %vm1120 = vcmp.ge.f32.partialorder %v616, 0.0
    %vm1121 = vcmp.ge.f32.partialorder %v618, 0.0
    %vm1122 = vcmp.ge.f32.partialorder %v729, 0.0
    %vm1123 = vcmp.ge.f32.partialorder %v731, 0.0
    %vm1124 = vcmp.ge.f32.partialorder %v842, 0.0
    %vm1125 = vcmp.ge.f32.partialorder %v844, 0.0
    %vm1126 = vcmp.ge.f32.partialorder %v955, 0.0
    %vm1127 = vcmp.ge.f32.partialorder %v957, 0.0
    %vm1128 = vcmp.ge.f32.partialorder %v1068, 0.0
    %vm1129 = vcmp.ge.f32.partialorder %v1070, 0.0
    %vm1130 = vcmp.ge.f32.partialorder %v283, 0.0
    %vm1131 = vcmp.ge.f32.partialorder %v285, 0.0
    %vm1132 = vcmp.ge.f32.partialorder %v396, 0.0
    %vm1133 = vcmp.ge.f32.partialorder %v398, 0.0
    %vm1134 = vcmp.ge.f32.partialorder %v509, 0.0
    %vm1135 = vcmp.ge.f32.partialorder %v511, 0.0
    %vm1136 = vcmp.ge.f32.partialorder %v622, 0.0
    %vm1137 = vcmp.ge.f32.partialorder %v624, 0.0
    %vm1138 = vcmp.ge.f32.partialorder %v735, 0.0
    %vm1139 = vcmp.ge.f32.partialorder %v737, 0.0
    %vm1140 = vcmp.ge.f32.partialorder %v848, 0.0
    %vm1141 = vcmp.ge.f32.partialorder %v850, 0.0
    %vm1142 = vcmp.ge.f32.partialorder %v961, 0.0
    %vm1143 = vcmp.ge.f32.partialorder %v963, 0.0
    %vm1144 = vcmp.ge.f32.partialorder %v1074, 0.0
    %vm1145 = vcmp.ge.f32.partialorder %v1076, 0.0
    %vm1146 = vcmp.ge.f32.partialorder %v289, 0.0
    %vm1147 = vcmp.ge.f32.partialorder %v291, 0.0
    %vm1148 = vcmp.ge.f32.partialorder %v402, 0.0
    %vm1149 = vcmp.ge.f32.partialorder %v404, 0.0
    %vm1150 = vcmp.ge.f32.partialorder %v515, 0.0
    %vm1151 = vcmp.ge.f32.partialorder %v517, 0.0
    %vm1152 = vcmp.ge.f32.partialorder %v628, 0.0
    %vm1153 = vcmp.ge.f32.partialorder %v630, 0.0
    %vm1154 = vcmp.ge.f32.partialorder %v741, 0.0
    %vm1155 = vcmp.ge.f32.partialorder %v743, 0.0
    %vm1156 = vcmp.ge.f32.partialorder %v854, 0.0
    %vm1157 = vcmp.ge.f32.partialorder %v856, 0.0
    %vm1158 = vcmp.ge.f32.partialorder %v967, 0.0
    %vm1159 = vcmp.ge.f32.partialorder %v969, 0.0
    %vm1160 = vcmp.ge.f32.partialorder %v1080, 0.0
    %vm1161 = vcmp.ge.f32.partialorder %v1082, 0.0
    %vm1162 = vcmp.ge.f32.partialorder %v295, 0.0
    %vm1163 = vcmp.ge.f32.partialorder %v297, 0.0
    %vm1164 = vcmp.ge.f32.partialorder %v408, 0.0
    %vm1165 = vcmp.ge.f32.partialorder %v410, 0.0
    %vm1166 = vcmp.ge.f32.partialorder %v521, 0.0
    %vm1167 = vcmp.ge.f32.partialorder %v523, 0.0
    %vm1168 = vcmp.ge.f32.partialorder %v634, 0.0
    %vm1169 = vcmp.ge.f32.partialorder %v636, 0.0
    %vm1170 = vcmp.ge.f32.partialorder %v747, 0.0
    %vm1171 = vcmp.ge.f32.partialorder %v749, 0.0
    %vm1172 = vcmp.ge.f32.partialorder %v860, 0.0
    %vm1173 = vcmp.ge.f32.partialorder %v862, 0.0
    %vm1174 = vcmp.ge.f32.partialorder %v973, 0.0
    %vm1175 = vcmp.ge.f32.partialorder %v975, 0.0
    %vm1176 = vcmp.ge.f32.partialorder %v1086, 0.0
    %vm1177 = vcmp.ge.f32.partialorder %v1088, 0.0
    %vm1178 = vcmp.ge.f32.partialorder %v301, 0.0
    %vm1179 = vcmp.ge.f32.partialorder %v303, 0.0
    %vm1180 = vcmp.ge.f32.partialorder %v414, 0.0
    %vm1181 = vcmp.ge.f32.partialorder %v416, 0.0
    %vm1182 = vcmp.ge.f32.partialorder %v527, 0.0
    %vm1183 = vcmp.ge.f32.partialorder %v529, 0.0
    %vm1184 = vcmp.ge.f32.partialorder %v640, 0.0
    %vm1185 = vcmp.ge.f32.partialorder %v642, 0.0
    %vm1186 = vcmp.ge.f32.partialorder %v753, 0.0
    %vm1187 = vcmp.ge.f32.partialorder %v755, 0.0
    %vm1188 = vcmp.ge.f32.partialorder %v866, 0.0
    %vm1189 = vcmp.ge.f32.partialorder %v868, 0.0
    %vm1190 = vcmp.ge.f32.partialorder %v979, 0.0
    %vm1191 = vcmp.ge.f32.partialorder %v981, 0.0
    %vm1192 = vcmp.ge.f32.partialorder %v1092, 0.0
    %vm1193 = vcmp.ge.f32.partialorder %v1094, 0.0
    %vm1194 = vcmp.ge.f32.partialorder %v307, 0.0
    %vm1195 = vcmp.ge.f32.partialorder %v309, 0.0
    %vm1196 = vcmp.ge.f32.partialorder %v420, 0.0
    %vm1197 = vcmp.ge.f32.partialorder %v422, 0.0
    %vm1198 = vcmp.ge.f32.partialorder %v533, 0.0
    %vm1199 = vcmp.ge.f32.partialorder %v535, 0.0
    %vm1200 = vcmp.ge.f32.partialorder %v646, 0.0
    %vm1201 = vcmp.ge.f32.partialorder %v648, 0.0
    %vm1202 = vcmp.ge.f32.partialorder %v759, 0.0
    %vm1203 = vcmp.ge.f32.partialorder %v761, 0.0
    %vm1204 = vcmp.ge.f32.partialorder %v872, 0.0
    %vm1205 = vcmp.ge.f32.partialorder %v874, 0.0
    %vm1206 = vcmp.ge.f32.partialorder %v985, 0.0
    %vm1207 = vcmp.ge.f32.partialorder %v987, 0.0
    %vm1208 = vcmp.ge.f32.partialorder %v1098, 0.0
    %vm1209 = vcmp.ge.f32.partialorder %v1100, 0.0
    %vm1210 = vcmp.ge.f32.partialorder %v313, 0.0
    %vm1211 = vcmp.ge.f32.partialorder %v315, 0.0
    %vm1212 = vcmp.ge.f32.partialorder %v426, 0.0
    %vm1213 = vcmp.ge.f32.partialorder %v428, 0.0
    %vm1214 = vcmp.ge.f32.partialorder %v539, 0.0
    %vm1215 = vcmp.ge.f32.partialorder %v541, 0.0
    %vm1216 = vcmp.ge.f32.partialorder %v652, 0.0
    %vm1217 = vcmp.ge.f32.partialorder %v654, 0.0
    %vm1218 = vcmp.ge.f32.partialorder %v765, 0.0
    %vm1219 = vcmp.ge.f32.partialorder %v767, 0.0
    %vm1220 = vcmp.ge.f32.partialorder %v878, 0.0
    %vm1221 = vcmp.ge.f32.partialorder %v880, 0.0
    %vm1222 = vcmp.ge.f32.partialorder %v991, 0.0
    %vm1223 = vcmp.ge.f32.partialorder %v993, 0.0
    %vm1224 = vcmp.ge.f32.partialorder %v1104, 0.0
    %vm1225 = vcmp.ge.f32.partialorder %v1106, 0.0
    %vm1226 = vcmp.ge.f32.partialorder %v319, 0.0
    %vm1227 = vcmp.ge.f32.partialorder %v321, 0.0
    %vm1228 = vcmp.ge.f32.partialorder %v432, 0.0
    %vm1229 = vcmp.ge.f32.partialorder %v434, 0.0
    %vm1230 = vcmp.ge.f32.partialorder %v545, 0.0
    %vm1231 = vcmp.ge.f32.partialorder %v547, 0.0
    %vm1232 = vcmp.ge.f32.partialorder %v658, 0.0
    %vm1233 = vcmp.ge.f32.partialorder %v660, 0.0
    %vm1234 = vcmp.ge.f32.partialorder %v771, 0.0
    %vm1235 = vcmp.ge.f32.partialorder %v773, 0.0
    %vm1236 = vcmp.ge.f32.partialorder %v884, 0.0
    %vm1237 = vcmp.ge.f32.partialorder %v886, 0.0
    %vm1238 = vcmp.ge.f32.partialorder %v997, 0.0
    %vm1239 = vcmp.ge.f32.partialorder %v999, 0.0
    %vm1240 = vcmp.ge.f32.partialorder %v1110, 0.0
    %vm1241 = vcmp.ge.f32.partialorder %v1112, 0.0
    %v1242 = vmul.f32 %v277, 0.1
    %v1243 = vmul.f32 %v279, 0.1
    %v1244 = vmul.f32 %v390, 0.1
    %v1245 = vmul.f32 %v392, 0.1
    %v1246 = vmul.f32 %v503, 0.1
    %v1247 = vmul.f32 %v505, 0.1
    %v1248 = vmul.f32 %v616, 0.1
    %v1249 = vmul.f32 %v618, 0.1
    %v1250 = vmul.f32 %v729, 0.1
    %v1251 = vmul.f32 %v731, 0.1
    %v1252 = vmul.f32 %v842, 0.1
    %v1253 = vmul.f32 %v844, 0.1
    %v1254 = vmul.f32 %v955, 0.1
    %v1255 = vmul.f32 %v957, 0.1
    %v1256 = vmul.f32 %v1068, 0.1
    %v1257 = vmul.f32 %v1070, 0.1
    %v1258 = vmul.f32 %v283, 0.1
    %v1259 = vmul.f32 %v285, 0.1
    %v1260 = vmul.f32 %v396, 0.1
    %v1261 = vmul.f32 %v398, 0.1
    %v1262 = vmul.f32 %v509, 0.1
    %v1263 = vmul.f32 %v511, 0.1
    %v1264 = vmul.f32 %v622, 0.1
    %v1265 = vmul.f32 %v624, 0.1
    %v1266 = vmul.f32 %v735, 0.1
    %v1267 = vmul.f32 %v737, 0.1
    %v1268 = vmul.f32 %v848, 0.1
    %v1269 = vmul.f32 %v850, 0.1
    %v1270 = vmul.f32 %v961, 0.1
    %v1271 = vmul.f32 %v963, 0.1
    %v1272 = vmul.f32 %v1074, 0.1
    %v1273 = vmul.f32 %v1076, 0.1
    %v1274 = vmul.f32 %v289, 0.1
    %v1275 = vmul.f32 %v291, 0.1
    %v1276 = vmul.f32 %v402, 0.1
    %v1277 = vmul.f32 %v404, 0.1
    %v1278 = vmul.f32 %v515, 0.1
    %v1279 = vmul.f32 %v517, 0.1
    %v1280 = vmul.f32 %v628, 0.1
    %v1281 = vmul.f32 %v630, 0.1
    %v1282 = vmul.f32 %v741, 0.1
    %v1283 = vmul.f32 %v743, 0.1
    %v1284 = vmul.f32 %v854, 0.1
    %v1285 = vmul.f32 %v856, 0.1
    %v1286 = vmul.f32 %v967, 0.1
    %v1287 = vmul.f32 %v969, 0.1
    %v1288 = vmul.f32 %v1080, 0.1
    %v1289 = vmul.f32 %v1082, 0.1
    %v1290 = vmul.f32 %v295, 0.1
    %v1291 = vmul.f32 %v297, 0.1
    %v1292 = vmul.f32 %v408, 0.1
    %v1293 = vmul.f32 %v410, 0.1
    %v1294 = vmul.f32 %v521, 0.1
    %v1295 = vmul.f32 %v523, 0.1
    %v1296 = vmul.f32 %v634, 0.1
    %v1297 = vmul.f32 %v636, 0.1
    %v1298 = vmul.f32 %v747, 0.1
    %v1299 = vmul.f32 %v749, 0.1
    %v1300 = vmul.f32 %v860, 0.1
    %v1301 = vmul.f32 %v862, 0.1
    %v1302 = vmul.f32 %v973, 0.1
    %v1303 = vmul.f32 %v975, 0.1
    %v1304 = vmul.f32 %v1086, 0.1
    %v1305 = vmul.f32 %v1088, 0.1
    %v1306 = vmul.f32 %v301, 0.1
    %v1307 = vmul.f32 %v303, 0.1
    %v1308 = vmul.f32 %v414, 0.1
    %v1309 = vmul.f32 %v416, 0.1
    %v1310 = vmul.f32 %v527, 0.1
    %v1311 = vmul.f32 %v529, 0.1
    %v1312 = vmul.f32 %v640, 0.1
    %v1313 = vmul.f32 %v642, 0.1
    %v1314 = vmul.f32 %v753, 0.1
    %v1315 = vmul.f32 %v755, 0.1
    %v1316 = vmul.f32 %v866, 0.1
    %v1317 = vmul.f32 %v868, 0.1
    %v1318 = vmul.f32 %v979, 0.1
    %v1319 = vmul.f32 %v981, 0.1
    %v1320 = vmul.f32 %v1092, 0.1
    %v1321 = vmul.f32 %v1094, 0.1
    %v1322 = vmul.f32 %v307, 0.1
    %v1323 = vmul.f32 %v309, 0.1
    %v1324 = vmul.f32 %v420, 0.1
    %v1325 = vmul.f32 %v422, 0.1
    %v1326 = vmul.f32 %v533, 0.1
    %v1327 = vmul.f32 %v535, 0.1
    %v1328 = vmul.f32 %v646, 0.1
    %v1329 = vmul.f32 %v648, 0.1
    %v1330 = vmul.f32 %v759, 0.1
    %v1331 = vmul.f32 %v761, 0.1
    %v1332 = vmul.f32 %v872, 0.1
    %v1333 = vmul.f32 %v874, 0.1
    %v1334 = vmul.f32 %v985, 0.1
    %v1335 = vmul.f32 %v987, 0.1
    %v1336 = vmul.f32 %v1098, 0.1
    %v1337 = vmul.f32 %v1100, 0.1
    %v1338 = vmul.f32 %v313, 0.1
    %v1339 = vmul.f32 %v315, 0.1
    %v1340 = vmul.f32 %v426, 0.1
    %v1341 = vmul.f32 %v428, 0.1
    %v1342 = vmul.f32 %v539, 0.1
    %v1343 = vmul.f32 %v541, 0.1
    %v1344 = vmul.f32 %v652, 0.1
    %v1345 = vmul.f32 %v654, 0.1
    %v1346 = vmul.f32 %v765, 0.1
    %v1347 = vmul.f32 %v767, 0.1
    %v1348 = vmul.f32 %v878, 0.1
    %v1349 = vmul.f32 %v880, 0.1
    %v1350 = vmul.f32 %v991, 0.1
    %v1351 = vmul.f32 %v993, 0.1
    %v1352 = vmul.f32 %v1104, 0.1
    %v1353 = vmul.f32 %v1106, 0.1
    %v1354 = vmul.f32 %v319, 0.1
    %v1355 = vmul.f32 %v321, 0.1
    %v1356 = vmul.f32 %v432, 0.1
    %v1357 = vmul.f32 %v434, 0.1
    %v1358 = vmul.f32 %v545, 0.1
    %v1359 = vmul.f32 %v547, 0.1
    %v1360 = vmul.f32 %v658, 0.1
    %v1361 = vmul.f32 %v660, 0.1
    %v1362 = vmul.f32 %v771, 0.1
    %v1363 = vmul.f32 %v773, 0.1
    %v1364 = vmul.f32 %v884, 0.1
    %v1365 = vmul.f32 %v886, 0.1
    %v1366 = vmul.f32 %v997, 0.1
    %v1367 = vmul.f32 %v999, 0.1
    %v1368 = vmul.f32 %v1110, 0.1
    %v1369 = vmul.f32 %v1112, 0.1
    %v1370 = vsel %vm1114, %v277, %v1242
    %v1371 = vsel %vm1115, %v279, %v1243
    %v1372 = vsel %vm1116, %v390, %v1244
    %v1373 = vsel %vm1117, %v392, %v1245
    %v1374 = vsel %vm1118, %v503, %v1246
    %v1375 = vsel %vm1119, %v505, %v1247
    %v1376 = vsel %vm1120, %v616, %v1248
    %v1377 = vsel %vm1121, %v618, %v1249
    %v1378 = vsel %vm1122, %v729, %v1250
    %v1379 = vsel %vm1123, %v731, %v1251
    %v1380 = vsel %vm1124, %v842, %v1252
    %v1381 = vsel %vm1125, %v844, %v1253
    %v1382 = vsel %vm1126, %v955, %v1254
    %v1383 = vsel %vm1127, %v957, %v1255
    %v1384 = vsel %vm1128, %v1068, %v1256
    %v1385 = vsel %vm1129, %v1070, %v1257
    %v1386 = vsel %vm1130, %v283, %v1258
    %v1387 = vsel %vm1131, %v285, %v1259
    %v1388 = vsel %vm1132, %v396, %v1260
    %v1389 = vsel %vm1133, %v398, %v1261
    %v1390 = vsel %vm1134, %v509, %v1262
    %v1391 = vsel %vm1135, %v511, %v1263
    %v1392 = vsel %vm1136, %v622, %v1264
    %v1393 = vsel %vm1137, %v624, %v1265
    %v1394 = vsel %vm1138, %v735, %v1266
    %v1395 = vsel %vm1139, %v737, %v1267
    %v1396 = vsel %vm1140, %v848, %v1268
    %v1397 = vsel %vm1141, %v850, %v1269
    %v1398 = vsel %vm1142, %v961, %v1270
    %v1399 = vsel %vm1143, %v963, %v1271
    %v1400 = vsel %vm1144, %v1074, %v1272
    %v1401 = vsel %vm1145, %v1076, %v1273
    %v1402 = vsel %vm1146, %v289, %v1274
    %v1403 = vsel %vm1147, %v291, %v1275
    %v1404 = vsel %vm1148, %v402, %v1276
    %v1405 = vsel %vm1149, %v404, %v1277
    %v1406 = vsel %vm1150, %v515, %v1278
    %v1407 = vsel %vm1151, %v517, %v1279
    %v1408 = vsel %vm1152, %v628, %v1280
    %v1409 = vsel %vm1153, %v630, %v1281
    %v1410 = vsel %vm1154, %v741, %v1282
    %v1411 = vsel %vm1155, %v743, %v1283
    %v1412 = vsel %vm1156, %v854, %v1284
    %v1413 = vsel %vm1157, %v856, %v1285
    %v1414 = vsel %vm1158, %v967, %v1286
    %v1415 = vsel %vm1159, %v969, %v1287
    %v1416 = vsel %vm1160, %v1080, %v1288
    %v1417 = vsel %vm1161, %v1082, %v1289
    %v1418 = vsel %vm1162, %v295, %v1290
    %v1419 = vsel %vm1163, %v297, %v1291
    %v1420 = vsel %vm1164, %v408, %v1292
    %v1421 = vsel %vm1165, %v410, %v1293
    %v1422 = vsel %vm1166, %v521, %v1294
    %v1423 = vsel %vm1167, %v523, %v1295
    %v1424 = vsel %vm1168, %v634, %v1296
    %v1425 = vsel %vm1169, %v636, %v1297
    %v1426 = vsel %vm1170, %v747, %v1298
    %v1427 = vsel %vm1171, %v749, %v1299
    %v1428 = vsel %vm1172, %v860, %v1300
    %v1429 = vsel %vm1173, %v862, %v1301
    %v1430 = vsel %vm1174, %v973, %v1302
    %v1431 = vsel %vm1175, %v975, %v1303
    %v1432 = vsel %vm1176, %v1086, %v1304
    %v1433 = vsel %vm1177, %v1088, %v1305
    %v1434 = vsel %vm1178, %v301, %v1306
    %v1435 = vsel %vm1179, %v303, %v1307
    %v1436 = vsel %vm1180, %v414, %v1308
    %v1437 = vsel %vm1181, %v416, %v1309
    %v1438 = vsel %vm1182, %v527, %v1310
    %v1439 = vsel %vm1183, %v529, %v1311
    %v1440 = vsel %vm1184, %v640, %v1312
    %v1441 = vsel %vm1185, %v642, %v1313
    %v1442 = vsel %vm1186, %v753, %v1314
    %v1443 = vsel %vm1187, %v755, %v1315
    %v1444 = vsel %vm1188, %v866, %v1316
    %v1445 = vsel %vm1189, %v868, %v1317
    %v1446 = vsel %vm1190, %v979, %v1318
    %v1447 = vsel %vm1191, %v981, %v1319
    %v1448 = vsel %vm1192, %v1092, %v1320
    %v1449 = vsel %vm1193, %v1094, %v1321
    %v1450 = vsel %vm1194, %v307, %v1322
    %v1451 = vsel %vm1195, %v309, %v1323
    %v1452 = vsel %vm1196, %v420, %v1324
    %v1453 = vsel %vm1197, %v422, %v1325
    %v1454 = vsel %vm1198, %v533, %v1326
    %v1455 = vsel %vm1199, %v535, %v1327
    %v1456 = vsel %vm1200, %v646, %v1328
    %v1457 = vsel %vm1201, %v648, %v1329
    %v1458 = vsel %vm1202, %v759, %v1330
    %v1459 = vsel %vm1203, %v761, %v1331
    %v1460 = vsel %vm1204, %v872, %v1332
    %v1461 = vsel %vm1205, %v874, %v1333
    %v1462 = vsel %vm1206, %v985, %v1334
    %v1463 = vsel %vm1207, %v987, %v1335
    %v1464 = vsel %vm1208, %v1098, %v1336
    %v1465 = vsel %vm1209, %v1100, %v1337
    %v1466 = vsel %vm1210, %v313, %v1338
    %v1467 = vsel %vm1211, %v315, %v1339
    %v1468 = vsel %vm1212, %v426, %v1340
    %v1469 = vsel %vm1213, %v428, %v1341
    %v1470 = vsel %vm1214, %v539, %v1342
    %v1471 = vsel %vm1215, %v541, %v1343
    %v1472 = vsel %vm1216, %v652, %v1344
    %v1473 = vsel %vm1217, %v654, %v1345
    %v1474 = vsel %vm1218, %v765, %v1346
    %v1475 = vsel %vm1219, %v767, %v1347
    %v1476 = vsel %vm1220, %v878, %v1348
    %v1477 = vsel %vm1221, %v880, %v1349
    %v1478 = vsel %vm1222, %v991, %v1350
    %v1479 = vsel %vm1223, %v993, %v1351
    %v1480 = vsel %vm1224, %v1104, %v1352
    %v1481 = vsel %vm1225, %v1106, %v1353
    %v1482 = vsel %vm1226, %v319, %v1354
    %v1483 = vsel %vm1227, %v321, %v1355
    %v1484 = vsel %vm1228, %v432, %v1356
    %v1485 = vsel %vm1229, %v434, %v1357
    %v1486 = vsel %vm1230, %v545, %v1358
    %v1487 = vsel %vm1231, %v547, %v1359
    %v1488 = vsel %vm1232, %v658, %v1360
    %v1489 = vsel %vm1233, %v660, %v1361
    %v1490 = vsel %vm1234, %v771, %v1362
    %v1491 = vsel %vm1235, %v773, %v1363
    %v1492 = vsel %vm1236, %v884, %v1364
    %v1493 = vsel %vm1237, %v886, %v1365
    %v1494 = vsel %vm1238, %v997, %v1366
    %v1495 = vsel %vm1239, %v999, %v1367
    %v1496 = vsel %vm1240, %v1110, %v1368
    %v1497 = vsel %vm1241, %v1112, %v1369
    %v1498 = vld [vmem:[%s3] ss:$8 sm:$0x3]
    %v1500 = vlaneseq
    %v1501 = vshrl.u32 %v1500, 7
    %v1502 = vsub.s32 0, %v1501
    %v1503 = vrot.slane %v1498, %v1502
    %v1504 = vlaneseq
    %v1505 = vshrl.u32 %v1504, 7
    %v1506 = vsub.s32 1, %v1505
    %v1507 = vrot.slane %v1498, %v1506
    %v1510 = vmul.f32 %v1370, %v1503
    %v1511 = vmul.f32 %v1371, %v1507
    %v1512 = vmul.f32 %v1386, %v1503
    %v1513 = vmul.f32 %v1387, %v1507
    %v1514 = vmul.f32 %v1402, %v1503
    %v1515 = vmul.f32 %v1403, %v1507
    %v1516 = vmul.f32 %v1418, %v1503
    %v1517 = vmul.f32 %v1419, %v1507
    %v1518 = vmul.f32 %v1434, %v1503
    %v1519 = vmul.f32 %v1435, %v1507
    %v1520 = vmul.f32 %v1450, %v1503
    %v1521 = vmul.f32 %v1451, %v1507
    %v1522 = vmul.f32 %v1466, %v1503
    %v1523 = vmul.f32 %v1467, %v1507
    %v1524 = vmul.f32 %v1482, %v1503
    %v1525 = vmul.f32 %v1483, %v1507
    %s1526 = scalar_lea.vmem %s3, 1
    %v1527 = vld [vmem:[%s1526] ss:$8 sm:$0x3]
    %v1529 = vlaneseq
    %v1530 = vshrl.u32 %v1529, 7
    %v1531 = vsub.s32 0, %v1530
    %v1532 = vrot.slane %v1527, %v1531
    %v1533 = vlaneseq
    %v1534 = vshrl.u32 %v1533, 7
    %v1535 = vsub.s32 1, %v1534
    %v1536 = vrot.slane %v1527, %v1535
    %v1539 = vmul.f32 %v1372, %v1532
    %v1540 = vmul.f32 %v1373, %v1536
    %v1541 = vmul.f32 %v1388, %v1532
    %v1542 = vmul.f32 %v1389, %v1536
    %v1543 = vmul.f32 %v1404, %v1532
    %v1544 = vmul.f32 %v1405, %v1536
    %v1545 = vmul.f32 %v1420, %v1532
    %v1546 = vmul.f32 %v1421, %v1536
    %v1547 = vmul.f32 %v1436, %v1532
    %v1548 = vmul.f32 %v1437, %v1536
    %v1549 = vmul.f32 %v1452, %v1532
    %v1550 = vmul.f32 %v1453, %v1536
    %v1551 = vmul.f32 %v1468, %v1532
    %v1552 = vmul.f32 %v1469, %v1536
    %v1553 = vmul.f32 %v1484, %v1532
    %v1554 = vmul.f32 %v1485, %v1536
    %v1555 = vadd.f32 %v1510, %v1539
    %v1556 = vadd.f32 %v1511, %v1540
    %v1557 = vadd.f32 %v1512, %v1541
    %v1558 = vadd.f32 %v1513, %v1542
    %v1559 = vadd.f32 %v1514, %v1543
    %v1560 = vadd.f32 %v1515, %v1544
    %v1561 = vadd.f32 %v1516, %v1545
    %v1562 = vadd.f32 %v1517, %v1546
    %v1563 = vadd.f32 %v1518, %v1547
    %v1564 = vadd.f32 %v1519, %v1548
    %v1565 = vadd.f32 %v1520, %v1549
    %v1566 = vadd.f32 %v1521, %v1550
    %v1567 = vadd.f32 %v1522, %v1551
    %v1568 = vadd.f32 %v1523, %v1552
    %v1569 = vadd.f32 %v1524, %v1553
    %v1570 = vadd.f32 %v1525, %v1554
    %s1571 = scalar_lea.vmem %s3, 2
    %v1572 = vld [vmem:[%s1571] ss:$8 sm:$0x3]
    %v1574 = vlaneseq
    %v1575 = vshrl.u32 %v1574, 7
    %v1576 = vsub.s32 0, %v1575
    %v1577 = vrot.slane %v1572, %v1576
    %v1578 = vlaneseq
    %v1579 = vshrl.u32 %v1578, 7
    %v1580 = vsub.s32 1, %v1579
    %v1581 = vrot.slane %v1572, %v1580
    %v1584 = vmul.f32 %v1374, %v1577
    %v1585 = vmul.f32 %v1375, %v1581
    %v1586 = vmul.f32 %v1390, %v1577
    %v1587 = vmul.f32 %v1391, %v1581
    %v1588 = vmul.f32 %v1406, %v1577
    %v1589 = vmul.f32 %v1407, %v1581
    %v1590 = vmul.f32 %v1422, %v1577
    %v1591 = vmul.f32 %v1423, %v1581
    %v1592 = vmul.f32 %v1438, %v1577
    %v1593 = vmul.f32 %v1439, %v1581
    %v1594 = vmul.f32 %v1454, %v1577
    %v1595 = vmul.f32 %v1455, %v1581
    %v1596 = vmul.f32 %v1470, %v1577
    %v1597 = vmul.f32 %v1471, %v1581
    %v1598 = vmul.f32 %v1486, %v1577
    %v1599 = vmul.f32 %v1487, %v1581
    %v1600 = vadd.f32 %v1555, %v1584
    %v1601 = vadd.f32 %v1556, %v1585
    %v1602 = vadd.f32 %v1557, %v1586
    %v1603 = vadd.f32 %v1558, %v1587
    %v1604 = vadd.f32 %v1559, %v1588
    %v1605 = vadd.f32 %v1560, %v1589
    %v1606 = vadd.f32 %v1561, %v1590
    %v1607 = vadd.f32 %v1562, %v1591
    %v1608 = vadd.f32 %v1563, %v1592
    %v1609 = vadd.f32 %v1564, %v1593
    %v1610 = vadd.f32 %v1565, %v1594
    %v1611 = vadd.f32 %v1566, %v1595
    %v1612 = vadd.f32 %v1567, %v1596
    %v1613 = vadd.f32 %v1568, %v1597
    %v1614 = vadd.f32 %v1569, %v1598
    %v1615 = vadd.f32 %v1570, %v1599
    %s1616 = scalar_lea.vmem %s3, 3
    %v1617 = vld [vmem:[%s1616] ss:$8 sm:$0x3]
    %v1619 = vlaneseq
    %v1620 = vshrl.u32 %v1619, 7
    %v1621 = vsub.s32 0, %v1620
    %v1622 = vrot.slane %v1617, %v1621
    %v1623 = vlaneseq
    %v1624 = vshrl.u32 %v1623, 7
    %v1625 = vsub.s32 1, %v1624
    %v1626 = vrot.slane %v1617, %v1625
    %v1629 = vmul.f32 %v1376, %v1622
    %v1630 = vmul.f32 %v1377, %v1626
    %v1631 = vmul.f32 %v1392, %v1622
    %v1632 = vmul.f32 %v1393, %v1626
    %v1633 = vmul.f32 %v1408, %v1622
    %v1634 = vmul.f32 %v1409, %v1626
    %v1635 = vmul.f32 %v1424, %v1622
    %v1636 = vmul.f32 %v1425, %v1626
    %v1637 = vmul.f32 %v1440, %v1622
    %v1638 = vmul.f32 %v1441, %v1626
    %v1639 = vmul.f32 %v1456, %v1622
    %v1640 = vmul.f32 %v1457, %v1626
    %v1641 = vmul.f32 %v1472, %v1622
    %v1642 = vmul.f32 %v1473, %v1626
    %v1643 = vmul.f32 %v1488, %v1622
    %v1644 = vmul.f32 %v1489, %v1626
    %v1645 = vadd.f32 %v1600, %v1629
    %v1646 = vadd.f32 %v1601, %v1630
    %v1647 = vadd.f32 %v1602, %v1631
    %v1648 = vadd.f32 %v1603, %v1632
    %v1649 = vadd.f32 %v1604, %v1633
    %v1650 = vadd.f32 %v1605, %v1634
    %v1651 = vadd.f32 %v1606, %v1635
    %v1652 = vadd.f32 %v1607, %v1636
    %v1653 = vadd.f32 %v1608, %v1637
    %v1654 = vadd.f32 %v1609, %v1638
    %v1655 = vadd.f32 %v1610, %v1639
    %v1656 = vadd.f32 %v1611, %v1640
    %v1657 = vadd.f32 %v1612, %v1641
    %v1658 = vadd.f32 %v1613, %v1642
    %v1659 = vadd.f32 %v1614, %v1643
    %v1660 = vadd.f32 %v1615, %v1644
    %s1661 = scalar_lea.vmem %s3, 4
    %v1662 = vld [vmem:[%s1661] ss:$8 sm:$0x3]
    %v1664 = vlaneseq
    %v1665 = vshrl.u32 %v1664, 7
    %v1666 = vsub.s32 0, %v1665
    %v1667 = vrot.slane %v1662, %v1666
    %v1668 = vlaneseq
    %v1669 = vshrl.u32 %v1668, 7
    %v1670 = vsub.s32 1, %v1669
    %v1671 = vrot.slane %v1662, %v1670
    %v1674 = vmul.f32 %v1378, %v1667
    %v1675 = vmul.f32 %v1379, %v1671
    %v1676 = vmul.f32 %v1394, %v1667
    %v1677 = vmul.f32 %v1395, %v1671
    %v1678 = vmul.f32 %v1410, %v1667
    %v1679 = vmul.f32 %v1411, %v1671
    %v1680 = vmul.f32 %v1426, %v1667
    %v1681 = vmul.f32 %v1427, %v1671
    %v1682 = vmul.f32 %v1442, %v1667
    %v1683 = vmul.f32 %v1443, %v1671
    %v1684 = vmul.f32 %v1458, %v1667
    %v1685 = vmul.f32 %v1459, %v1671
    %v1686 = vmul.f32 %v1474, %v1667
    %v1687 = vmul.f32 %v1475, %v1671
    %v1688 = vmul.f32 %v1490, %v1667
    %v1689 = vmul.f32 %v1491, %v1671
    %v1690 = vadd.f32 %v1645, %v1674
    %v1691 = vadd.f32 %v1646, %v1675
    %v1692 = vadd.f32 %v1647, %v1676
    %v1693 = vadd.f32 %v1648, %v1677
    %v1694 = vadd.f32 %v1649, %v1678
    %v1695 = vadd.f32 %v1650, %v1679
    %v1696 = vadd.f32 %v1651, %v1680
    %v1697 = vadd.f32 %v1652, %v1681
    %v1698 = vadd.f32 %v1653, %v1682
    %v1699 = vadd.f32 %v1654, %v1683
    %v1700 = vadd.f32 %v1655, %v1684
    %v1701 = vadd.f32 %v1656, %v1685
    %v1702 = vadd.f32 %v1657, %v1686
    %v1703 = vadd.f32 %v1658, %v1687
    %v1704 = vadd.f32 %v1659, %v1688
    %v1705 = vadd.f32 %v1660, %v1689
    %s1706 = scalar_lea.vmem %s3, 5
    %v1707 = vld [vmem:[%s1706] ss:$8 sm:$0x3]
    %v1709 = vlaneseq
    %v1710 = vshrl.u32 %v1709, 7
    %v1711 = vsub.s32 0, %v1710
    %v1712 = vrot.slane %v1707, %v1711
    %v1713 = vlaneseq
    %v1714 = vshrl.u32 %v1713, 7
    %v1715 = vsub.s32 1, %v1714
    %v1716 = vrot.slane %v1707, %v1715
    %v1719 = vmul.f32 %v1380, %v1712
    %v1720 = vmul.f32 %v1381, %v1716
    %v1721 = vmul.f32 %v1396, %v1712
    %v1722 = vmul.f32 %v1397, %v1716
    %v1723 = vmul.f32 %v1412, %v1712
    %v1724 = vmul.f32 %v1413, %v1716
    %v1725 = vmul.f32 %v1428, %v1712
    %v1726 = vmul.f32 %v1429, %v1716
    %v1727 = vmul.f32 %v1444, %v1712
    %v1728 = vmul.f32 %v1445, %v1716
    %v1729 = vmul.f32 %v1460, %v1712
    %v1730 = vmul.f32 %v1461, %v1716
    %v1731 = vmul.f32 %v1476, %v1712
    %v1732 = vmul.f32 %v1477, %v1716
    %v1733 = vmul.f32 %v1492, %v1712
    %v1734 = vmul.f32 %v1493, %v1716
    %v1735 = vadd.f32 %v1690, %v1719
    %v1736 = vadd.f32 %v1691, %v1720
    %v1737 = vadd.f32 %v1692, %v1721
    %v1738 = vadd.f32 %v1693, %v1722
    %v1739 = vadd.f32 %v1694, %v1723
    %v1740 = vadd.f32 %v1695, %v1724
    %v1741 = vadd.f32 %v1696, %v1725
    %v1742 = vadd.f32 %v1697, %v1726
    %v1743 = vadd.f32 %v1698, %v1727
    %v1744 = vadd.f32 %v1699, %v1728
    %v1745 = vadd.f32 %v1700, %v1729
    %v1746 = vadd.f32 %v1701, %v1730
    %v1747 = vadd.f32 %v1702, %v1731
    %v1748 = vadd.f32 %v1703, %v1732
    %v1749 = vadd.f32 %v1704, %v1733
    %v1750 = vadd.f32 %v1705, %v1734
    %s1751 = scalar_lea.vmem %s3, 6
    %v1752 = vld [vmem:[%s1751] ss:$8 sm:$0x3]
    %v1754 = vlaneseq
    %v1755 = vshrl.u32 %v1754, 7
    %v1756 = vsub.s32 0, %v1755
    %v1757 = vrot.slane %v1752, %v1756
    %v1758 = vlaneseq
    %v1759 = vshrl.u32 %v1758, 7
    %v1760 = vsub.s32 1, %v1759
    %v1761 = vrot.slane %v1752, %v1760
    %v1764 = vmul.f32 %v1382, %v1757
    %v1765 = vmul.f32 %v1383, %v1761
    %v1766 = vmul.f32 %v1398, %v1757
    %v1767 = vmul.f32 %v1399, %v1761
    %v1768 = vmul.f32 %v1414, %v1757
    %v1769 = vmul.f32 %v1415, %v1761
    %v1770 = vmul.f32 %v1430, %v1757
    %v1771 = vmul.f32 %v1431, %v1761
    %v1772 = vmul.f32 %v1446, %v1757
    %v1773 = vmul.f32 %v1447, %v1761
    %v1774 = vmul.f32 %v1462, %v1757
    %v1775 = vmul.f32 %v1463, %v1761
    %v1776 = vmul.f32 %v1478, %v1757
    %v1777 = vmul.f32 %v1479, %v1761
    %v1778 = vmul.f32 %v1494, %v1757
    %v1779 = vmul.f32 %v1495, %v1761
    %v1780 = vadd.f32 %v1735, %v1764
    %v1781 = vadd.f32 %v1736, %v1765
    %v1782 = vadd.f32 %v1737, %v1766
    %v1783 = vadd.f32 %v1738, %v1767
    %v1784 = vadd.f32 %v1739, %v1768
    %v1785 = vadd.f32 %v1740, %v1769
    %v1786 = vadd.f32 %v1741, %v1770
    %v1787 = vadd.f32 %v1742, %v1771
    %v1788 = vadd.f32 %v1743, %v1772
    %v1789 = vadd.f32 %v1744, %v1773
    %v1790 = vadd.f32 %v1745, %v1774
    %v1791 = vadd.f32 %v1746, %v1775
    %v1792 = vadd.f32 %v1747, %v1776
    %v1793 = vadd.f32 %v1748, %v1777
    %v1794 = vadd.f32 %v1749, %v1778
    %v1795 = vadd.f32 %v1750, %v1779
    %s1796 = scalar_lea.vmem %s3, 7
    %v1797 = vld [vmem:[%s1796] ss:$8 sm:$0x3]
    %v1799 = vlaneseq
    %v1800 = vshrl.u32 %v1799, 7
    %v1801 = vsub.s32 0, %v1800
    %v1802 = vrot.slane %v1797, %v1801
    %v1803 = vlaneseq
    %v1804 = vshrl.u32 %v1803, 7
    %v1805 = vsub.s32 1, %v1804
    %v1806 = vrot.slane %v1797, %v1805
    %v1809 = vmul.f32 %v1384, %v1802
    %v1810 = vmul.f32 %v1385, %v1806
    %v1811 = vmul.f32 %v1400, %v1802
    %v1812 = vmul.f32 %v1401, %v1806
    %v1813 = vmul.f32 %v1416, %v1802
    %v1814 = vmul.f32 %v1417, %v1806
    %v1815 = vmul.f32 %v1432, %v1802
    %v1816 = vmul.f32 %v1433, %v1806
    %v1817 = vmul.f32 %v1448, %v1802
    %v1818 = vmul.f32 %v1449, %v1806
    %v1819 = vmul.f32 %v1464, %v1802
    %v1820 = vmul.f32 %v1465, %v1806
    %v1821 = vmul.f32 %v1480, %v1802
    %v1822 = vmul.f32 %v1481, %v1806
    %v1823 = vmul.f32 %v1496, %v1802
    %v1824 = vmul.f32 %v1497, %v1806
    %v1825 = vadd.f32 %v1780, %v1809
    %v1826 = vadd.f32 %v1781, %v1810
    %v1827 = vadd.f32 %v1782, %v1811
    %v1828 = vadd.f32 %v1783, %v1812
    %v1829 = vadd.f32 %v1784, %v1813
    %v1830 = vadd.f32 %v1785, %v1814
    %v1831 = vadd.f32 %v1786, %v1815
    %v1832 = vadd.f32 %v1787, %v1816
    %v1833 = vadd.f32 %v1788, %v1817
    %v1834 = vadd.f32 %v1789, %v1818
    %v1835 = vadd.f32 %v1790, %v1819
    %v1836 = vadd.f32 %v1791, %v1820
    %v1837 = vadd.f32 %v1792, %v1821
    %v1838 = vadd.f32 %v1793, %v1822
    %v1839 = vadd.f32 %v1794, %v1823
    %v1840 = vadd.f32 %v1795, %v1824
    %v1841 = vld [vmem:[%s4] sm:$0x3]
    %v1843 = vlaneseq
    %v1844 = vshrl.u32 %v1843, 7
    %v1845 = vsub.s32 0, %v1844
    %v1846 = vrot.slane %v1841, %v1845
    %v1847 = vlaneseq
    %v1848 = vshrl.u32 %v1847, 7
    %v1849 = vsub.s32 1, %v1848
    %v1850 = vrot.slane %v1841, %v1849
    %v1853 = vadd.f32 %v1825, %v1846
    %v1854 = vadd.f32 %v1826, %v1850
    %v1855 = vadd.f32 %v1827, %v1846
    %v1856 = vadd.f32 %v1828, %v1850
    %v1857 = vadd.f32 %v1829, %v1846
    %v1858 = vadd.f32 %v1830, %v1850
    %v1859 = vadd.f32 %v1831, %v1846
    %v1860 = vadd.f32 %v1832, %v1850
    %v1861 = vadd.f32 %v1833, %v1846
    %v1862 = vadd.f32 %v1834, %v1850
    %v1863 = vadd.f32 %v1835, %v1846
    %v1864 = vadd.f32 %v1836, %v1850
    %v1865 = vadd.f32 %v1837, %v1846
    %v1866 = vadd.f32 %v1838, %v1850
    %v1867 = vadd.f32 %v1839, %v1846
    %v1868 = vadd.f32 %v1840, %v1850
    %v1869 = vxor.u32 %v1853, 2147483648
    %v1870 = vxor.u32 %v1854, 2147483648
    %v1871 = vxor.u32 %v1855, 2147483648
    %v1872 = vxor.u32 %v1856, 2147483648
    %v1873 = vxor.u32 %v1857, 2147483648
    %v1874 = vxor.u32 %v1858, 2147483648
    %v1875 = vxor.u32 %v1859, 2147483648
    %v1876 = vxor.u32 %v1860, 2147483648
    %v1877 = vxor.u32 %v1861, 2147483648
    %v1878 = vxor.u32 %v1862, 2147483648
    %v1879 = vxor.u32 %v1863, 2147483648
    %v1880 = vxor.u32 %v1864, 2147483648
    %v1881 = vxor.u32 %v1865, 2147483648
    %v1882 = vxor.u32 %v1866, 2147483648
    %v1883 = vxor.u32 %v1867, 2147483648
    %v1884 = vxor.u32 %v1868, 2147483648
    %v1885 = vmul.f32 %v1869, 1.442695
    %v1886 = vpow.pop %v1885
    %v1887 = vmul.f32 %v1870, 1.442695
    %v1888 = vpow.pop %v1887
    %v1889 = vmul.f32 %v1871, 1.442695
    %v1890 = vpow.pop %v1889
    %v1891 = vmul.f32 %v1872, 1.442695
    %v1892 = vpow.pop %v1891
    %v1893 = vmul.f32 %v1873, 1.442695
    %v1894 = vpow.pop %v1893
    %v1895 = vmul.f32 %v1874, 1.442695
    %v1896 = vpow.pop %v1895
    %v1897 = vmul.f32 %v1875, 1.442695
    %v1898 = vpow.pop %v1897
    %v1899 = vmul.f32 %v1876, 1.442695
    %v1900 = vpow.pop %v1899
    %v1901 = vmul.f32 %v1877, 1.442695
    %v1902 = vpow.pop %v1901
    %v1903 = vmul.f32 %v1878, 1.442695
    %v1904 = vpow.pop %v1903
    %v1905 = vmul.f32 %v1879, 1.442695
    %v1906 = vpow.pop %v1905
    %v1907 = vmul.f32 %v1880, 1.442695
    %v1908 = vpow.pop %v1907
    %v1909 = vmul.f32 %v1881, 1.442695
    %v1910 = vpow.pop %v1909
    %v1911 = vmul.f32 %v1882, 1.442695
    %v1912 = vpow.pop %v1911
    %v1913 = vmul.f32 %v1883, 1.442695
    %v1914 = vpow.pop %v1913
    %v1915 = vmul.f32 %v1884, 1.442695
    %v1916 = vpow.pop %v1915
    %v1917 = vadd.f32 %v1886, 1.0
    %v1918 = vadd.f32 %v1888, 1.0
    %v1919 = vadd.f32 %v1890, 1.0
    %v1920 = vadd.f32 %v1892, 1.0
    %v1921 = vadd.f32 %v1894, 1.0
    %v1922 = vadd.f32 %v1896, 1.0
    %v1923 = vadd.f32 %v1898, 1.0
    %v1924 = vadd.f32 %v1900, 1.0
    %v1925 = vadd.f32 %v1902, 1.0
    %v1926 = vadd.f32 %v1904, 1.0
    %v1927 = vadd.f32 %v1906, 1.0
    %v1928 = vadd.f32 %v1908, 1.0
    %v1929 = vadd.f32 %v1910, 1.0
    %v1930 = vadd.f32 %v1912, 1.0
    %v1931 = vadd.f32 %v1914, 1.0
    %v1932 = vadd.f32 %v1916, 1.0
    %v1933 = vrcp.pop %v1917
    %v1934 = vmul.f32 1.0, %v1933
    %v1935 = vrcp.pop %v1918
    %v1936 = vmul.f32 1.0, %v1935
    %v1937 = vrcp.pop %v1919
    %v1938 = vmul.f32 1.0, %v1937
    %v1939 = vrcp.pop %v1920
    %v1940 = vmul.f32 1.0, %v1939
    %v1941 = vrcp.pop %v1921
    %v1942 = vmul.f32 1.0, %v1941
    %v1943 = vrcp.pop %v1922
    %v1944 = vmul.f32 1.0, %v1943
    %v1945 = vrcp.pop %v1923
    %v1946 = vmul.f32 1.0, %v1945
    %v1947 = vrcp.pop %v1924
    %v1948 = vmul.f32 1.0, %v1947
    %v1949 = vrcp.pop %v1925
    %v1950 = vmul.f32 1.0, %v1949
    %v1951 = vrcp.pop %v1926
    %v1952 = vmul.f32 1.0, %v1951
    %v1953 = vrcp.pop %v1927
    %v1954 = vmul.f32 1.0, %v1953
    %v1955 = vrcp.pop %v1928
    %v1956 = vmul.f32 1.0, %v1955
    %v1957 = vrcp.pop %v1929
    %v1958 = vmul.f32 1.0, %v1957
    %v1959 = vrcp.pop %v1930
    %v1960 = vmul.f32 1.0, %v1959
    %v1961 = vrcp.pop %v1931
    %v1962 = vmul.f32 1.0, %v1961
    %v1963 = vrcp.pop %v1932
    %v1964 = vmul.f32 1.0, %v1963
    %1965 = vst [vmem:[#allocation2] sm:$0xff] %v1934
    %1966 = vst [vmem:[#allocation2 + $0x8] sm:$0xff] %v1936
    %1967 = vst [vmem:[#allocation2 + $0x10] sm:$0xff] %v1938
    %1968 = vst [vmem:[#allocation2 + $0x18] sm:$0xff] %v1940
    %1969 = vst [vmem:[#allocation2 + $0x20] sm:$0xff] %v1942
    %1970 = vst [vmem:[#allocation2 + $0x28] sm:$0xff] %v1944
    %1971 = vst [vmem:[#allocation2 + $0x30] sm:$0xff] %v1946
    %1972 = vst [vmem:[#allocation2 + $0x38] sm:$0xff] %v1948
    %1973 = vst [vmem:[#allocation2 + $0x40] sm:$0xff] %v1950
    %1974 = vst [vmem:[#allocation2 + $0x48] sm:$0xff] %v1952
    %1975 = vst [vmem:[#allocation2 + $0x50] sm:$0xff] %v1954
    %1976 = vst [vmem:[#allocation2 + $0x58] sm:$0xff] %v1956
    %1977 = vst [vmem:[#allocation2 + $0x60] sm:$0xff] %v1958
    %1978 = vst [vmem:[#allocation2 + $0x68] sm:$0xff] %v1960
    %1979 = vst [vmem:[#allocation2 + $0x70] sm:$0xff] %v1962
    %1980 = vst [vmem:[#allocation2 + $0x78] sm:$0xff] %v1964
    %v1981 = vld [vmem:[%s5] sm:$0x1]
    %v1982 = vld [vmem:[%s6] sm:$0x1]
    %v1983 = vld [vmem:[%s7] sm:$0x1]
    %v1984 = vld [vmem:[%s8] sm:$0xff]
    %v1985 = vld [vmem:[#allocation3] sm:$0xff]
    %v1986 = vld [vmem:[#allocation7] sm:$0xff]
    %s1987 = smul.u32 0, 2
    %s1988 = smul.addr %s1987, 8
    %s1989 = scalar_lea.vmem [#allocation2], %s1988
    %v1990 = vld [vmem:[%s1989] sm:$0xff]
    %v1991 = vld [vmem:[%s1989 + $0x8] sm:$0xff]
    %1992 = vrot.lane.b32.xlu0 %v1985, 1
    %v1993 = vpop.permute.xlu0 %1992
    %1994 = vrot.lane.b32.xlu0 %v1985, 2
    %v1995 = vpop.permute.xlu0 %1994
    %v1997 = vlaneseq
    %v1998 = vshrl.u32 %v1997, 7
    %v1999 = vsub.s32 0, %v1998
    %v2000 = vrot.slane %v1981, %v1999
    %v2002 = vmul.f32 %v1993, %v2000
    %v2003 = vadd.f32 %v1985, %v2002
    %v2005 = vlaneseq
    %v2006 = vshrl.u32 %v2005, 7
    %v2007 = vsub.s32 0, %v2006
    %v2008 = vrot.slane %v1982, %v2007
    %v2010 = vmul.f32 %v1995, %v2008
    %v2011 = vadd.f32 %v1993, %v2010
    %v2012 = vmul.f32 %v2011, %v1991
    %v2014 = vlaneseq
    %v2015 = vshrl.u32 %v2014, 7
    %v2016 = vsub.s32 0, %v2015
    %v2017 = vrot.slane %v1983, %v2016
    %v2019 = vadd.f32 %v2012, %v2017
    %v2020 = vmul.f32 %v2003, %v1990
    %v2021 = vadd.f32 %v2019, %v2020
    %s2022 = smul.u32 0, 8
    %s2023 = scvt.s32.f32 %s2022
    %v2024 = vstv %s2023
    %vm2025 = vcmp.gt.f32.partialorder %v1984, %v2024
    %v2026 = vsel %vm2025, 1.0, 0.0
    %2028 = vset.pattern.permute.xlu0 0
    %2029 = vperm.xlu0 %2028, %v2026
    %v2030 = vpop.permute.xlu0 %2029
    %v2032 = vmul.f32 %v2030, %v2021
    %v2033 = vadd.f32 %v1986, %v2032
    %s2034 = smul.u32 1, 2
    %s2035 = smul.addr %s2034, 8
    %s2036 = scalar_lea.vmem [#allocation2], %s2035
    %v2037 = vld [vmem:[%s2036] sm:$0xff]
    %v2038 = vld [vmem:[%s2036 + $0x8] sm:$0xff]
    %2039 = vrot.lane.b32.xlu0 %v2021, 1
    %v2040 = vpop.permute.xlu0 %2039
    %2041 = vrot.lane.b32.xlu0 %v2021, 2
    %v2042 = vpop.permute.xlu0 %2041
    %v2043 = vmul.f32 %v2040, %v2000
    %v2044 = vadd.f32 %v2021, %v2043
    %v2045 = vmul.f32 %v2042, %v2008
    %v2046 = vadd.f32 %v2040, %v2045
    %v2047 = vmul.f32 %v2046, %v2038
    %v2048 = vadd.f32 %v2047, %v2017
    %v2049 = vmul.f32 %v2044, %v2037
    %v2050 = vadd.f32 %v2048, %v2049
    %s2051 = sadd.s32 %s2022, 1
    %s2052 = scvt.s32.f32 %s2051
    %v2053 = vstv %s2052
    %vm2054 = vcmp.gt.f32.partialorder %v1984, %v2053
    %v2055 = vsel %vm2054, 1.0, 0.0
    %2057 = vset.pattern.permute.xlu0 0
    %2058 = vperm.xlu0 %2057, %v2055
    %v2059 = vpop.permute.xlu0 %2058
    %v2061 = vmul.f32 %v2059, %v2050
    %v2062 = vadd.f32 %v2033, %v2061
    %s2063 = smul.u32 2, 2
    %s2064 = smul.addr %s2063, 8
    %s2065 = scalar_lea.vmem [#allocation2], %s2064
    %v2066 = vld [vmem:[%s2065] sm:$0xff]
    %v2067 = vld [vmem:[%s2065 + $0x8] sm:$0xff]
    %2068 = vrot.lane.b32.xlu0 %v2050, 1
    %v2069 = vpop.permute.xlu0 %2068
    %2070 = vrot.lane.b32.xlu0 %v2050, 2
    %v2071 = vpop.permute.xlu0 %2070
    %v2072 = vmul.f32 %v2069, %v2000
    %v2073 = vadd.f32 %v2050, %v2072
    %v2074 = vmul.f32 %v2071, %v2008
    %v2075 = vadd.f32 %v2069, %v2074
    %v2076 = vmul.f32 %v2075, %v2067
    %v2077 = vadd.f32 %v2076, %v2017
    %v2078 = vmul.f32 %v2073, %v2066
    %v2079 = vadd.f32 %v2077, %v2078
    %s2080 = sadd.s32 %s2022, 2
    %s2081 = scvt.s32.f32 %s2080
    %v2082 = vstv %s2081
    %vm2083 = vcmp.gt.f32.partialorder %v1984, %v2082
    %v2084 = vsel %vm2083, 1.0, 0.0
    %2086 = vset.pattern.permute.xlu0 0
    %2087 = vperm.xlu0 %2086, %v2084
    %v2088 = vpop.permute.xlu0 %2087
    %v2090 = vmul.f32 %v2088, %v2079
    %v2091 = vadd.f32 %v2062, %v2090
    %s2092 = smul.u32 3, 2
    %s2093 = smul.addr %s2092, 8
    %s2094 = scalar_lea.vmem [#allocation2], %s2093
    %v2095 = vld [vmem:[%s2094] sm:$0xff]
    %v2096 = vld [vmem:[%s2094 + $0x8] sm:$0xff]
    %2097 = vrot.lane.b32.xlu0 %v2079, 1
    %v2098 = vpop.permute.xlu0 %2097
    %2099 = vrot.lane.b32.xlu0 %v2079, 2
    %v2100 = vpop.permute.xlu0 %2099
    %v2101 = vmul.f32 %v2098, %v2000
    %v2102 = vadd.f32 %v2079, %v2101
    %v2103 = vmul.f32 %v2100, %v2008
    %v2104 = vadd.f32 %v2098, %v2103
    %v2105 = vmul.f32 %v2104, %v2096
    %v2106 = vadd.f32 %v2105, %v2017
    %v2107 = vmul.f32 %v2102, %v2095
    %v2108 = vadd.f32 %v2106, %v2107
    %s2109 = sadd.s32 %s2022, 3
    %s2110 = scvt.s32.f32 %s2109
    %v2111 = vstv %s2110
    %vm2112 = vcmp.gt.f32.partialorder %v1984, %v2111
    %v2113 = vsel %vm2112, 1.0, 0.0
    %2115 = vset.pattern.permute.xlu0 0
    %2116 = vperm.xlu0 %2115, %v2113
    %v2117 = vpop.permute.xlu0 %2116
    %v2119 = vmul.f32 %v2117, %v2108
    %v2120 = vadd.f32 %v2091, %v2119
    %s2121 = smul.u32 4, 2
    %s2122 = smul.addr %s2121, 8
    %s2123 = scalar_lea.vmem [#allocation2], %s2122
    %v2124 = vld [vmem:[%s2123] sm:$0xff]
    %v2125 = vld [vmem:[%s2123 + $0x8] sm:$0xff]
    %2126 = vrot.lane.b32.xlu0 %v2108, 1
    %v2127 = vpop.permute.xlu0 %2126
    %2128 = vrot.lane.b32.xlu0 %v2108, 2
    %v2129 = vpop.permute.xlu0 %2128
    %v2130 = vmul.f32 %v2127, %v2000
    %v2131 = vadd.f32 %v2108, %v2130
    %v2132 = vmul.f32 %v2129, %v2008
    %v2133 = vadd.f32 %v2127, %v2132
    %v2134 = vmul.f32 %v2133, %v2125
    %v2135 = vadd.f32 %v2134, %v2017
    %v2136 = vmul.f32 %v2131, %v2124
    %v2137 = vadd.f32 %v2135, %v2136
    %s2138 = sadd.s32 %s2022, 4
    %s2139 = scvt.s32.f32 %s2138
    %v2140 = vstv %s2139
    %vm2141 = vcmp.gt.f32.partialorder %v1984, %v2140
    %v2142 = vsel %vm2141, 1.0, 0.0
    %2144 = vset.pattern.permute.xlu0 0
    %2145 = vperm.xlu0 %2144, %v2142
    %v2146 = vpop.permute.xlu0 %2145
    %v2148 = vmul.f32 %v2146, %v2137
    %v2149 = vadd.f32 %v2120, %v2148
    %s2150 = smul.u32 5, 2
    %s2151 = smul.addr %s2150, 8
    %s2152 = scalar_lea.vmem [#allocation2], %s2151
    %v2153 = vld [vmem:[%s2152] sm:$0xff]
    %v2154 = vld [vmem:[%s2152 + $0x8] sm:$0xff]
    %2155 = vrot.lane.b32.xlu0 %v2137, 1
    %v2156 = vpop.permute.xlu0 %2155
    %2157 = vrot.lane.b32.xlu0 %v2137, 2
    %v2158 = vpop.permute.xlu0 %2157
    %v2159 = vmul.f32 %v2156, %v2000
    %v2160 = vadd.f32 %v2137, %v2159
    %v2161 = vmul.f32 %v2158, %v2008
    %v2162 = vadd.f32 %v2156, %v2161
    %v2163 = vmul.f32 %v2162, %v2154
    %v2164 = vadd.f32 %v2163, %v2017
    %v2165 = vmul.f32 %v2160, %v2153
    %v2166 = vadd.f32 %v2164, %v2165
    %s2167 = sadd.s32 %s2022, 5
    %s2168 = scvt.s32.f32 %s2167
    %v2169 = vstv %s2168
    %vm2170 = vcmp.gt.f32.partialorder %v1984, %v2169
    %v2171 = vsel %vm2170, 1.0, 0.0
    %2173 = vset.pattern.permute.xlu0 0
    %2174 = vperm.xlu0 %2173, %v2171
    %v2175 = vpop.permute.xlu0 %2174
    %v2177 = vmul.f32 %v2175, %v2166
    %v2178 = vadd.f32 %v2149, %v2177
    %s2179 = smul.u32 6, 2
    %s2180 = smul.addr %s2179, 8
    %s2181 = scalar_lea.vmem [#allocation2], %s2180
    %v2182 = vld [vmem:[%s2181] sm:$0xff]
    %v2183 = vld [vmem:[%s2181 + $0x8] sm:$0xff]
    %2184 = vrot.lane.b32.xlu0 %v2166, 1
    %v2185 = vpop.permute.xlu0 %2184
    %2186 = vrot.lane.b32.xlu0 %v2166, 2
    %v2187 = vpop.permute.xlu0 %2186
    %v2188 = vmul.f32 %v2185, %v2000
    %v2189 = vadd.f32 %v2166, %v2188
    %v2190 = vmul.f32 %v2187, %v2008
    %v2191 = vadd.f32 %v2185, %v2190
    %v2192 = vmul.f32 %v2191, %v2183
    %v2193 = vadd.f32 %v2192, %v2017
    %v2194 = vmul.f32 %v2189, %v2182
    %v2195 = vadd.f32 %v2193, %v2194
    %s2196 = sadd.s32 %s2022, 6
    %s2197 = scvt.s32.f32 %s2196
    %v2198 = vstv %s2197
    %vm2199 = vcmp.gt.f32.partialorder %v1984, %v2198
    %v2200 = vsel %vm2199, 1.0, 0.0
    %2202 = vset.pattern.permute.xlu0 0
    %2203 = vperm.xlu0 %2202, %v2200
    %v2204 = vpop.permute.xlu0 %2203
    %v2206 = vmul.f32 %v2204, %v2195
    %v2207 = vadd.f32 %v2178, %v2206
    %s2208 = smul.u32 7, 2
    %s2209 = smul.addr %s2208, 8
    %s2210 = scalar_lea.vmem [#allocation2], %s2209
    %v2211 = vld [vmem:[%s2210] sm:$0xff]
    %v2212 = vld [vmem:[%s2210 + $0x8] sm:$0xff]
    %2213 = vrot.lane.b32.xlu0 %v2195, 1
    %v2214 = vpop.permute.xlu0 %2213
    %2215 = vrot.lane.b32.xlu0 %v2195, 2
    %v2216 = vpop.permute.xlu0 %2215
    %v2217 = vmul.f32 %v2214, %v2000
    %v2218 = vadd.f32 %v2195, %v2217
    %v2219 = vmul.f32 %v2216, %v2008
    %v2220 = vadd.f32 %v2214, %v2219
    %v2221 = vmul.f32 %v2220, %v2212
    %v2222 = vadd.f32 %v2221, %v2017
    %v2223 = vmul.f32 %v2218, %v2211
    %v2224 = vadd.f32 %v2222, %v2223
    %s2225 = sadd.s32 %s2022, 7
    %s2226 = scvt.s32.f32 %s2225
    %v2227 = vstv %s2226
    %vm2228 = vcmp.gt.f32.partialorder %v1984, %v2227
    %v2229 = vsel %vm2228, 1.0, 0.0
    %2231 = vset.pattern.permute.xlu0 0
    %2232 = vperm.xlu0 %2231, %v2229
    %v2233 = vpop.permute.xlu0 %2232
    %v2235 = vmul.f32 %v2233, %v2224
    %v2236 = vadd.f32 %v2207, %v2235
    %2237 = vst [vmem:[#allocation3] sm:$0xff] %v2224
    %2238 = vst [vmem:[#allocation7] sm:$0xff] %v2236
    // Predicated region
    $region46: #{tpu_custom_call.1} parent=1 // pred_check
      _
    $region47: #{tpu_custom_call.1} parent=1 // pred_check_branch
      %2240 = sbr.rel (0) target = $region49
    $region48: #{tpu_custom_call.1} parent=1 // pred_region
      %s2242 = ssub.s32 128, 128
      %2243 = vsyncadd [#allocation6], %s2242
      %s2245 = sshll.u32 [#allocation7], 4
      %s2246 = int_to_ptr.vmem [resolvable:$true] %s2245
      %2248 = dma.vmem_to_hbm [thread:$0]  %s2246, 128, %s9, [#allocation6]
    $region49: #{tpu_custom_call.1} parent=1 // pred_fallthru
      _
    // Predicated region
    $region50: #{tpu_custom_call.1} parent=1 // pred_check
      _
    $region51: #{tpu_custom_call.1} parent=1 // pred_check_branch
      %2250 = sbr.rel (0) target = $region53
    $region52: #{tpu_custom_call.1} parent=1 // pred_region
      %2251 = dma.done [#allocation6], 128
    $region53: #{tpu_custom_call.1} parent=1 // pred_fallthru
      _
    %2252 = vsyncpa [#allocation5], 1
    %2253 = vsyncpa [#allocation6], 1

</llo_original>
